<compile_context>
chip_gen: v7x
topology: tpu7x:2x2x1
jax: 0.10.0
libtpu: 0.0.40
codegen_flags: <defaults>
</compile_context>

<pallas_src>
import jax
import jax.numpy as jnp
from jax import lax
from jax.experimental import pallas as pl
from jax.experimental.pallas import tpu as pltpu

_GN_EPS = 1e-5
_LRELU_SLOPE = 0.01


def _round_up(x, m):
    return (x + m - 1) // m * m


# ----------------------------- Pallas kernels -----------------------------

def _gn_lrelu_epilogue(acc, gmat_ref, gamma_ref, beta_ref, o_ref):
    """acc: (Cout, Sp) f32 conv output; padded S columns are exact zeros."""
    s1 = jnp.sum(acc, axis=1, keepdims=True)            # (Cout, 1) sum
    s2 = jnp.sum(acc * acc, axis=1, keepdims=True)      # (Cout, 1) sum of squares
    # gmat[i, j] = 1/(Cg*S_real) if channel j is in channel i's group else 0,
    # so these tiny mat-vecs broadcast per-group E[x], E[x^2] back to channels
    # (padded columns contribute 0 to the sums, real count is in gmat).
    mean = jnp.dot(gmat_ref[...], s1, preferred_element_type=jnp.float32)
    ex2 = jnp.dot(gmat_ref[...], s2, preferred_element_type=jnp.float32)
    var = jnp.maximum(ex2 - mean * mean, 0.0)            # guard fp cancellation
    inv = lax.rsqrt(var + _GN_EPS)
    y = (acc - mean) * (inv * gamma_ref[...]) + beta_ref[...]
    o_ref[...] = jnp.where(y >= 0, y, _LRELU_SLOPE * y).astype(o_ref.dtype)


def _fused_kernel_1k(w_ref, cols_ref, gmat_ref, gamma_ref, beta_ref, o_ref):
    # Whole reduction in one K tile: no accumulator scratch, no pl.when.
    acc = jnp.dot(w_ref[...], cols_ref[...], preferred_element_type=jnp.float32)
    _gn_lrelu_epilogue(acc, gmat_ref, gamma_ref, beta_ref, o_ref)


def _fused_kernel_multik(w_ref, cols_ref, gmat_ref, gamma_ref, beta_ref, o_ref,
                         acc_ref):
    @pl.when(pl.program_id(1) == 0)
    def _():
        acc_ref[...] = jnp.zeros_like(acc_ref)

    acc_ref[...] += jnp.dot(w_ref[...], cols_ref[...],
                            preferred_element_type=jnp.float32)

    @pl.when(pl.program_id(1) == pl.num_programs(1) - 1)
    def _():
        _gn_lrelu_epilogue(acc_ref[...], gmat_ref, gamma_ref, beta_ref, o_ref)


# ------------------------------- JAX glue ---------------------------------

def _pad_input(x, padding, circular_padding):
    """CustomConv3d padding: circular along W only, zeros along T/H."""
    pt, ph, pw = padding
    if circular_padding:
        if pw:
            x = jnp.pad(x, ((0, 0), (0, 0), (0, 0), (0, 0), (pw, pw)),
                        mode='wrap')
        if pt or ph:
            x = jnp.pad(x, ((0, 0), (0, 0), (pt, pt), (ph, ph), (0, 0)))
    else:
        if pt or ph or pw:
            x = jnp.pad(x, ((0, 0), (0, 0), (pt, pt), (ph, ph), (pw, pw)))
    return x


def _im2col_per_sample(x, ksize, stride):
    """x: (N, C, T, H, W) padded -> cols (N, K, S); K ordering matches
    w.reshape(Cout, -1) (channel slowest, then dt, dh, dw)."""
    N, C, T, H, W = x.shape
    kt, kh, kw = ksize
    st, sh, sw = stride
    To = (T - kt) // st + 1
    Ho = (H - kh) // sh + 1
    Wo = (W - kw) // sw + 1
    patches = []
    for dt in range(kt):
        for dh in range(kh):
            for dw in range(kw):
                patches.append(
                    x[:, :,
                      dt:dt + (To - 1) * st + 1:st,
                      dh:dh + (Ho - 1) * sh + 1:sh,
                      dw:dw + (Wo - 1) * sw + 1:sw])
    cols = jnp.stack(patches, axis=2)            # (N, C, taps, To, Ho, Wo)
    return cols.reshape(N, C * kt * kh * kw, To * Ho * Wo), (To, Ho, Wo)


def fused_conv3d_gn_lrelu(x, w, gamma, beta, groups, stride, padding,
                          circular_padding, out_dtype):
    """CustomConv3d(bias=False) + GroupNorm(affine) + LeakyReLU in one
    pallas_call.  x: (N, C, T, H, W) -> (N, Cout, To, Ho, Wo) in out_dtype."""
    Cout = w.shape[0]
    ksize = w.shape[2:]

    # bf16 before patch formation halves the traffic of that pass.
    xp = _pad_input(x.astype(jnp.bfloat16), padding, circular_padding)
    cols, (To, Ho, Wo) = _im2col_per_sample(xp, ksize, stride)  # (N, K, S) bf16
    N, K, S = cols.shape

    # Lane-dense S tiles (>=128); one K tile whenever it fits (K <= 2048).
    Sp = _round_up(S, 128)
    tk = min(_round_up(K, 128), 2048)
    Kp = _round_up(K, tk)
    nk = Kp // tk

    cols = jnp.pad(cols, ((0, 0), (0, Kp - K), (0, Sp - S)))
    wmat = jnp.pad(w.reshape(Cout, K).astype(jnp.bfloat16),
                   ((0, 0), (0, Kp - K)))

    # Per-group reduction/broadcast matrix with 1/count folded in.
    Cg = Cout // groups
    gid = jnp.arange(Cout) // Cg
    gmat = (gid[:, None] == gid[None, :]).astype(jnp.float32) / float(Cg * S)
    gamma_c = gamma.astype(jnp.float32).reshape(Cout, 1)
    beta_c = beta.astype(jnp.float32).reshape(Cout, 1)

    out_bytes = jnp.dtype(out_dtype).itemsize
    vmem_est = (2 * tk * Sp * 2            # double-buffered bf16 cols block
                + 2 * Cout * Sp * out_bytes
                + Cout * Sp * 4            # f32 accumulator
                + 2 * Cout * tk + (1 << 20))
    vmem_limit = int(min(64 * 1024 * 1024, max(4 * 1024 * 1024, 2 * vmem_est)))

    if nk == 1:
        grid = (N,)
        in_specs = [
            pl.BlockSpec((Cout, Kp), lambda n: (0, 0)),
            pl.BlockSpec((None, Kp, Sp), lambda n: (n, 0, 0)),
            pl.BlockSpec((Cout, Cout), lambda n: (0, 0)),
            pl.BlockSpec((Cout, 1), lambda n: (0, 0)),
            pl.BlockSpec((Cout, 1), lambda n: (0, 0)),
        ]
        out_spec = pl.BlockSpec((None, Cout, Sp), lambda n: (n, 0, 0))
        kernel = _fused_kernel_1k
        scratch = []
        semantics = ("parallel",)
    else:
        grid = (N, nk)                       # reduction (K) axis last
        in_specs = [
            pl.BlockSpec((Cout, tk), lambda n, k: (0, k)),
            pl.BlockSpec((None, tk, Sp), lambda n, k: (n, k, 0)),
            pl.BlockSpec((Cout, Cout), lambda n, k: (0, 0)),
            pl.BlockSpec((Cout, 1), lambda n, k: (0, 0)),
            pl.BlockSpec((Cout, 1), lambda n, k: (0, 0)),
        ]
        out_spec = pl.BlockSpec((None, Cout, Sp), lambda n, k: (n, 0, 0))
        kernel = _fused_kernel_multik
        scratch = [pltpu.VMEM((Cout, Sp), jnp.float32)]
        semantics = ("parallel", "arbitrary")

    out = pl.pallas_call(
        kernel,
        out_shape=jax.ShapeDtypeStruct((N, Cout, Sp), out_dtype),
        grid=grid,
        in_specs=in_specs,
        out_specs=out_spec,
        scratch_shapes=scratch,
        compiler_params=pltpu.CompilerParams(
            dimension_semantics=semantics,
            vmem_limit_bytes=vmem_limit),
    )(wmat, cols, gmat, gamma_c, beta_c)

    # Drop the S padding (no-op when S is already a multiple of 128).
    return out[:, :, :S].reshape(N, Cout, To, Ho, Wo)


def down_block_forward(x, params, cfg):
    """conv0 -> GN -> LReLU -> conv1 -> GN -> LReLU (each stage fused)."""
    assert cfg['MODEL']['NORM'] == 'group'   # TODO(synk): batch/instance norm
    circ = cfg['MODEL']['CIRCULAR_PADDING']
    npg = cfg['MODEL']['N_CHANNELS_PER_GROUP']
    c_in = params['w0'].shape[0]
    c_out = params['w1'].shape[0]

    y = fused_conv3d_gn_lrelu(x, params['w0'], params['g0'], params['b0'],
                              groups=c_in // npg, stride=(1, 1, 1),
                              padding=(1, 1, 1), circular_padding=circ,
                              out_dtype=jnp.bfloat16)      # feeds bf16 MXU next
    y = fused_conv3d_gn_lrelu(y, params['w1'], params['g1'], params['b1'],
                              groups=c_out // npg, stride=(1, 2, 4),
                              padding=(0, 0, 0), circular_padding=circ,
                              out_dtype=jnp.float32)
    return y


# ------------------------- f32 reference (for checking) --------------------

def _ref_stage(x, w, gamma, beta, groups, stride, padding, circ):
    xp = _pad_input(x.astype(jnp.float32), padding, circ)
    y = lax.conv_general_dilated(
        xp, w.astype(jnp.float32), window_strides=stride, padding='VALID',
        dimension_numbers=('NCDHW', 'OIDHW', 'NCDHW'))
    N, C, T, H, W = y.shape
    Cg = C // groups
    yr = y.reshape(N, groups, Cg * T * H * W)
    mean = yr.mean(axis=2, keepdims=True)
    var = yr.var(axis=2, keepdims=True)
    yn = ((yr - mean) / jnp.sqrt(var + _GN_EPS)).reshape(N, C, T, H, W)
    yn = yn * gamma.reshape(1, C, 1, 1, 1) + beta.reshape(1, C, 1, 1, 1)
    return jnp.where(yn >= 0, yn, _LRELU_SLOPE * yn)


# --------------------------------- main ------------------------------------

if __name__ == "__main__":
    cfg = {'MODEL': {'NORM': 'group', 'N_CHANNELS_PER_GROUP': 2,
                     'CIRCULAR_PADDING': True}}
    in_channels, out_channels, temporal_kernel_size = 4, 8, 2

    key = jax.random.PRNGKey(0)
    kx, k0, k1 = jax.random.split(key, 3)
    # x: (N, C, T, H, W)
    x = jax.random.normal(kx, (2, in_channels, 4, 8, 16), jnp.float32)

    params = dict(
        # conv0: Conv3d(in, in, kernel=(3,3,3), bias=False)
        w0=0.1 * jax.random.normal(k0, (in_channels, in_channels, 3, 3, 3),
                                   jnp.float32),
        g0=jnp.ones((in_channels,), jnp.float32),
        b0=jnp.zeros((in_channels,), jnp.float32),
        # conv1: Conv3d(in, out, kernel=(tk,2,4), stride=(1,2,4), bias=False)
        w1=0.1 * jax.random.normal(
            k1, (out_channels, in_channels, temporal_kernel_size, 2, 4),
            jnp.float32),
        g1=jnp.ones((out_channels,), jnp.float32),
        b1=jnp.zeros((out_channels,), jnp.float32),
    )

    fwd = jax.jit(lambda xx, pp: down_block_forward(xx, pp, cfg))
    out = fwd(x, params)
    jax.block_until_ready(out)

    # (N, C_out, T - tk + 1, H/2, W/4) = (2, 8, 3, 4, 4)
    assert out.shape == (2, out_channels, 3, 4, 4), out.shape
    assert bool(jnp.all(jnp.isfinite(out)))

    # f32 reference check (tolerance covers the explicit bf16-MXU decision).
    ref = _ref_stage(x, params['w0'], params['g0'], params['b0'],
                     in_channels // 2, (1, 1, 1), (1, 1, 1), True)
    ref = _ref_stage(ref, params['w1'], params['g1'], params['b1'],
                     out_channels // 2, (1, 2, 4), (0, 0, 0), True)
    max_err = float(jnp.max(jnp.abs(out.astype(jnp.float32) - ref)))
    assert max_err < 0.15, max_err

    print("KERNEL_OK")
</pallas_src>

<mosaic_0001>
module attributes {stable_mosaic.version = 11 : i64} {
  func.func @_fused_kernel_1k(%arg0: i32, %arg1: memref<4x128xbf16, #tpu.memory_space<vmem>>, %arg2: memref<1x128x512xbf16, #tpu.memory_space<vmem>>, %arg3: memref<4x4xf32, #tpu.memory_space<vmem>>, %arg4: memref<4x1xf32, #tpu.memory_space<vmem>>, %arg5: memref<4x1xf32, #tpu.memory_space<vmem>>, %arg6: memref<1x4x512xbf16, #tpu.memory_space<vmem>>) attributes {dimension_semantics = [#tpu.dimension_semantics<parallel>], iteration_bounds = array<i64: 2>, scalar_prefetch = 0 : i64, scratch_operands = 0 : i64, tpu.core_type = #tpu.core_type<tc>, window_params = [{pipeline_mode = #tpu.pipeline_mode<synchronous>, transform_indices = @transform_0, window_bounds = array<i64: 4, 128>}, {transform_indices = @transform_1, window_bounds = array<i64: 1, 128, 512>}, {pipeline_mode = #tpu.pipeline_mode<synchronous>, transform_indices = @transform_2, window_bounds = array<i64: 4, 4>}, {pipeline_mode = #tpu.pipeline_mode<synchronous>, transform_indices = @transform_3, window_bounds = array<i64: 4, 1>}, {pipeline_mode = #tpu.pipeline_mode<synchronous>, transform_indices = @transform_4, window_bounds = array<i64: 4, 1>}, {transform_indices = @transform_5, window_bounds = array<i64: 1, 4, 512>}]} {
    %c0 = arith.constant 0 : index
    %c0_0 = arith.constant 0 : index
    %0 = vector.load %arg1[%c0, %c0_0] : memref<4x128xbf16, #tpu.memory_space<vmem>>, vector<4x128xbf16>
    %c0_1 = arith.constant 0 : index
    %c0_2 = arith.constant 0 : index
    %c0_3 = arith.constant 0 : index
    %1 = vector.load %arg2[%c0_1, %c0_2, %c0_3] : memref<1x128x512xbf16, #tpu.memory_space<vmem>>, vector<1x128x512xbf16>
    %2 = vector.shape_cast %1 : vector<1x128x512xbf16> to vector<128x512xbf16>
    %cst = arith.constant dense<0.000000e+00> : vector<4x512xf32>
    %3 = tpu.matmul %0, %2, %cst {dimension_numbers = #tpu.dot_dimension_numbers<[1], [0], [0], [1], [0, 0, 1, 1], [], []>} : vector<4x128xbf16>, vector<128x512xbf16>, vector<4x512xf32> -> vector<4x512xf32>
    %cst_4 = arith.constant dense<0.000000e+00> : vector<4xf32>
    %4 = vector.multi_reduction <add>, %3, %cst_4 [1] : vector<4x512xf32> to vector<4xf32>
    %5 = vector.shape_cast %4 : vector<4xf32> to vector<4x1xf32>
    %6 = arith.mulf %3, %3 : vector<4x512xf32>
    %cst_5 = arith.constant dense<0.000000e+00> : vector<4xf32>
    %7 = vector.multi_reduction <add>, %6, %cst_5 [1] : vector<4x512xf32> to vector<4xf32>
    %8 = vector.shape_cast %7 : vector<4xf32> to vector<4x1xf32>
    %c0_6 = arith.constant 0 : index
    %c0_7 = arith.constant 0 : index
    %9 = vector.load %arg3[%c0_6, %c0_7] : memref<4x4xf32, #tpu.memory_space<vmem>>, vector<4x4xf32>
    %cst_8 = arith.constant dense<0.000000e+00> : vector<4x1xf32>
    %10 = tpu.matmul %9, %5, %cst_8 {dimension_numbers = #tpu.dot_dimension_numbers<[1], [0], [0], [1], [0, 0, 1, 1], [], []>} : vector<4x4xf32>, vector<4x1xf32>, vector<4x1xf32> -> vector<4x1xf32>
    %c0_9 = arith.constant 0 : index
    %c0_10 = arith.constant 0 : index
    %11 = vector.load %arg3[%c0_9, %c0_10] : memref<4x4xf32, #tpu.memory_space<vmem>>, vector<4x4xf32>
    %cst_11 = arith.constant dense<0.000000e+00> : vector<4x1xf32>
    %12 = tpu.matmul %11, %8, %cst_11 {dimension_numbers = #tpu.dot_dimension_numbers<[1], [0], [0], [1], [0, 0, 1, 1], [], []>} : vector<4x4xf32>, vector<4x1xf32>, vector<4x1xf32> -> vector<4x1xf32>
    %13 = arith.mulf %10, %10 : vector<4x1xf32>
    %14 = arith.subf %12, %13 : vector<4x1xf32>
    %cst_12 = arith.constant 0.000000e+00 : f32
    %15 = vector.broadcast %cst_12 : f32 to vector<4x1xf32>
    %16 = arith.maximumf %14, %15 : vector<4x1xf32>
    %cst_13 = arith.constant 9.99999974E-6 : f32
    %17 = vector.broadcast %cst_13 : f32 to vector<4x1xf32>
    %18 = arith.addf %16, %17 : vector<4x1xf32>
    %19 = math.rsqrt %18 : vector<4x1xf32>
    %20 = vector.broadcast %10 : vector<4x1xf32> to vector<4x512xf32>
    %21 = arith.subf %3, %20 : vector<4x512xf32>
    %c0_14 = arith.constant 0 : index
    %c0_15 = arith.constant 0 : index
    %22 = vector.load %arg4[%c0_14, %c0_15] : memref<4x1xf32, #tpu.memory_space<vmem>>, vector<4x1xf32>
    %23 = arith.mulf %19, %22 : vector<4x1xf32>
    %24 = vector.broadcast %23 : vector<4x1xf32> to vector<4x512xf32>
    %25 = arith.mulf %21, %24 : vector<4x512xf32>
    %c0_16 = arith.constant 0 : index
    %c0_17 = arith.constant 0 : index
    %26 = vector.load %arg5[%c0_16, %c0_17] : memref<4x1xf32, #tpu.memory_space<vmem>>, vector<4x1xf32>
    %27 = vector.broadcast %26 : vector<4x1xf32> to vector<4x512xf32>
    %28 = arith.addf %25, %27 : vector<4x512xf32>
    %cst_18 = arith.constant 0.000000e+00 : f32
    %29 = vector.broadcast %cst_18 : f32 to vector<4x512xf32>
    %30 = arith.cmpf oge, %28, %29 : vector<4x512xf32>
    %cst_19 = arith.constant 0.00999999977 : f32
    %31 = vector.broadcast %cst_19 : f32 to vector<4x512xf32>
    %32 = arith.mulf %31, %28 : vector<4x512xf32>
    %33 = arith.select %30, %28, %32 : vector<4x512xi1>, vector<4x512xf32>
    %34 = arith.truncf %33 : vector<4x512xf32> to vector<4x512xbf16>
    %c0_20 = arith.constant 0 : index
    %c0_21 = arith.constant 0 : index
    %c0_22 = arith.constant 0 : index
    %35 = vector.load %arg6[%c0_20, %c0_21, %c0_22] : memref<1x4x512xbf16, #tpu.memory_space<vmem>>, vector<1x4x512xbf16>
    %36 = vector.shape_cast %35 : vector<1x4x512xbf16> to vector<4x512xbf16>
    %37 = vector.shape_cast %34 : vector<4x512xbf16> to vector<1x4x512xbf16>
    tpu.vector_store %arg6[%c0_20, %c0_21, %c0_22], %37 {strides = array<i32>} : memref<1x4x512xbf16, #tpu.memory_space<vmem>>, vector<1x4x512xbf16>,
    return
  }
  func.func @transform_0(%arg0: i32) -> (i32, i32) {
    %c0_i32 = arith.constant 0 : i32
    %c0_i32_0 = arith.constant 0 : i32
    %c0_i32_1 = arith.constant 0 : i32
    return %c0_i32, %c0_i32_0 : i32, i32
  }
  func.func @transform_1(%arg0: i32) -> (i32, i32, i32) {
    %c0_i32 = arith.constant 0 : i32
    %c0_i32_0 = arith.constant 0 : i32
    %c0_i32_1 = arith.constant 0 : i32
    return %arg0, %c0_i32, %c0_i32_0 : i32, i32, i32
  }
  func.func @transform_2(%arg0: i32) -> (i32, i32) {
    %c0_i32 = arith.constant 0 : i32
    %c0_i32_0 = arith.constant 0 : i32
    %c0_i32_1 = arith.constant 0 : i32
    return %c0_i32, %c0_i32_0 : i32, i32
  }
  func.func @transform_3(%arg0: i32) -> (i32, i32) {
    %c0_i32 = arith.constant 0 : i32
    %c0_i32_0 = arith.constant 0 : i32
    %c0_i32_1 = arith.constant 0 : i32
    return %c0_i32, %c0_i32_0 : i32, i32
  }
  func.func @transform_4(%arg0: i32) -> (i32, i32) {
    %c0_i32 = arith.constant 0 : i32
    %c0_i32_0 = arith.constant 0 : i32
    %c0_i32_1 = arith.constant 0 : i32
    return %c0_i32, %c0_i32_0 : i32, i32
  }
  func.func @transform_5(%arg0: i32) -> (i32, i32, i32) {
    %c0_i32 = arith.constant 0 : i32
    %c0_i32_0 = arith.constant 0 : i32
    %c0_i32_1 = arith.constant 0 : i32
    return %arg0, %c0_i32, %c0_i32_0 : i32, i32, i32
  }
}

module attributes {stable_mosaic.version = 11 : i64} {
  func.func @_fused_kernel_1k(%arg0: i32, %arg1: memref<8x128xbf16, #tpu.memory_space<vmem>>, %arg2: memref<1x128x128xbf16, #tpu.memory_space<vmem>>, %arg3: memref<8x8xf32, #tpu.memory_space<vmem>>, %arg4: memref<8x1xf32, #tpu.memory_space<vmem>>, %arg5: memref<8x1xf32, #tpu.memory_space<vmem>>, %arg6: memref<1x8x128xf32, #tpu.memory_space<vmem>>) attributes {dimension_semantics = [#tpu.dimension_semantics<parallel>], iteration_bounds = array<i64: 2>, scalar_prefetch = 0 : i64, scratch_operands = 0 : i64, tpu.core_type = #tpu.core_type<tc>, window_params = [{pipeline_mode = #tpu.pipeline_mode<synchronous>, transform_indices = @transform_0, window_bounds = array<i64: 8, 128>}, {transform_indices = @transform_1, window_bounds = array<i64: 1, 128, 128>}, {pipeline_mode = #tpu.pipeline_mode<synchronous>, transform_indices = @transform_2, window_bounds = array<i64: 8, 8>}, {pipeline_mode = #tpu.pipeline_mode<synchronous>, transform_indices = @transform_3, window_bounds = array<i64: 8, 1>}, {pipeline_mode = #tpu.pipeline_mode<synchronous>, transform_indices = @transform_4, window_bounds = array<i64: 8, 1>}, {transform_indices = @transform_5, window_bounds = array<i64: 1, 8, 128>}]} {
    %c0 = arith.constant 0 : index
    %c0_0 = arith.constant 0 : index
    %0 = vector.load %arg1[%c0, %c0_0] : memref<8x128xbf16, #tpu.memory_space<vmem>>, vector<8x128xbf16>
    %c0_1 = arith.constant 0 : index
    %c0_2 = arith.constant 0 : index
    %c0_3 = arith.constant 0 : index
    %1 = vector.load %arg2[%c0_1, %c0_2, %c0_3] : memref<1x128x128xbf16, #tpu.memory_space<vmem>>, vector<1x128x128xbf16>
    %2 = vector.shape_cast %1 : vector<1x128x128xbf16> to vector<128x128xbf16>
    %cst = arith.constant dense<0.000000e+00> : vector<8x128xf32>
    %3 = tpu.matmul %0, %2, %cst {dimension_numbers = #tpu.dot_dimension_numbers<[1], [0], [0], [1], [0, 0, 1, 1], [], []>} : vector<8x128xbf16>, vector<128x128xbf16>, vector<8x128xf32> -> vector<8x128xf32>
    %cst_4 = arith.constant dense<0.000000e+00> : vector<8xf32>
    %4 = vector.multi_reduction <add>, %3, %cst_4 [1] : vector<8x128xf32> to vector<8xf32>
    %5 = vector.shape_cast %4 : vector<8xf32> to vector<8x1xf32>
    %6 = arith.mulf %3, %3 : vector<8x128xf32>
    %cst_5 = arith.constant dense<0.000000e+00> : vector<8xf32>
    %7 = vector.multi_reduction <add>, %6, %cst_5 [1] : vector<8x128xf32> to vector<8xf32>
    %8 = vector.shape_cast %7 : vector<8xf32> to vector<8x1xf32>
    %c0_6 = arith.constant 0 : index
    %c0_7 = arith.constant 0 : index
    %9 = vector.load %arg3[%c0_6, %c0_7] : memref<8x8xf32, #tpu.memory_space<vmem>>, vector<8x8xf32>
    %cst_8 = arith.constant dense<0.000000e+00> : vector<8x1xf32>
    %10 = tpu.matmul %9, %5, %cst_8 {dimension_numbers = #tpu.dot_dimension_numbers<[1], [0], [0], [1], [0, 0, 1, 1], [], []>} : vector<8x8xf32>, vector<8x1xf32>, vector<8x1xf32> -> vector<8x1xf32>
    %c0_9 = arith.constant 0 : index
    %c0_10 = arith.constant 0 : index
    %11 = vector.load %arg3[%c0_9, %c0_10] : memref<8x8xf32, #tpu.memory_space<vmem>>, vector<8x8xf32>
    %cst_11 = arith.constant dense<0.000000e+00> : vector<8x1xf32>
    %12 = tpu.matmul %11, %8, %cst_11 {dimension_numbers = #tpu.dot_dimension_numbers<[1], [0], [0], [1], [0, 0, 1, 1], [], []>} : vector<8x8xf32>, vector<8x1xf32>, vector<8x1xf32> -> vector<8x1xf32>
    %13 = arith.mulf %10, %10 : vector<8x1xf32>
    %14 = arith.subf %12, %13 : vector<8x1xf32>
    %cst_12 = arith.constant 0.000000e+00 : f32
    %15 = vector.broadcast %cst_12 : f32 to vector<8x1xf32>
    %16 = arith.maximumf %14, %15 : vector<8x1xf32>
    %cst_13 = arith.constant 9.99999974E-6 : f32
    %17 = vector.broadcast %cst_13 : f32 to vector<8x1xf32>
    %18 = arith.addf %16, %17 : vector<8x1xf32>
    %19 = math.rsqrt %18 : vector<8x1xf32>
    %20 = vector.broadcast %10 : vector<8x1xf32> to vector<8x128xf32>
    %21 = arith.subf %3, %20 : vector<8x128xf32>
    %c0_14 = arith.constant 0 : index
    %c0_15 = arith.constant 0 : index
    %22 = vector.load %arg4[%c0_14, %c0_15] : memref<8x1xf32, #tpu.memory_space<vmem>>, vector<8x1xf32>
    %23 = arith.mulf %19, %22 : vector<8x1xf32>
    %24 = vector.broadcast %23 : vector<8x1xf32> to vector<8x128xf32>
    %25 = arith.mulf %21, %24 : vector<8x128xf32>
    %c0_16 = arith.constant 0 : index
    %c0_17 = arith.constant 0 : index
    %26 = vector.load %arg5[%c0_16, %c0_17] : memref<8x1xf32, #tpu.memory_space<vmem>>, vector<8x1xf32>
    %27 = vector.broadcast %26 : vector<8x1xf32> to vector<8x128xf32>
    %28 = arith.addf %25, %27 : vector<8x128xf32>
    %cst_18 = arith.constant 0.000000e+00 : f32
    %29 = vector.broadcast %cst_18 : f32 to vector<8x128xf32>
    %30 = arith.cmpf oge, %28, %29 : vector<8x128xf32>
    %cst_19 = arith.constant 0.00999999977 : f32
    %31 = vector.broadcast %cst_19 : f32 to vector<8x128xf32>
    %32 = arith.mulf %31, %28 : vector<8x128xf32>
    %33 = arith.select %30, %28, %32 : vector<8x128xi1>, vector<8x128xf32>
    %c0_20 = arith.constant 0 : index
    %c0_21 = arith.constant 0 : index
    %c0_22 = arith.constant 0 : index
    %34 = vector.load %arg6[%c0_20, %c0_21, %c0_22] : memref<1x8x128xf32, #tpu.memory_space<vmem>>, vector<1x8x128xf32>
    %35 = vector.shape_cast %34 : vector<1x8x128xf32> to vector<8x128xf32>
    %36 = vector.shape_cast %33 : vector<8x128xf32> to vector<1x8x128xf32>
    tpu.vector_store %arg6[%c0_20, %c0_21, %c0_22], %36 {strides = array<i32>} : memref<1x8x128xf32, #tpu.memory_space<vmem>>, vector<1x8x128xf32>,
    return
  }
  func.func @transform_0(%arg0: i32) -> (i32, i32) {
    %c0_i32 = arith.constant 0 : i32
    %c0_i32_0 = arith.constant 0 : i32
    %c0_i32_1 = arith.constant 0 : i32
    return %c0_i32, %c0_i32_0 : i32, i32
  }
  func.func @transform_1(%arg0: i32) -> (i32, i32, i32) {
    %c0_i32 = arith.constant 0 : i32
    %c0_i32_0 = arith.constant 0 : i32
    %c0_i32_1 = arith.constant 0 : i32
    return %arg0, %c0_i32, %c0_i32_0 : i32, i32, i32
  }
  func.func @transform_2(%arg0: i32) -> (i32, i32) {
    %c0_i32 = arith.constant 0 : i32
    %c0_i32_0 = arith.constant 0 : i32
    %c0_i32_1 = arith.constant 0 : i32
    return %c0_i32, %c0_i32_0 : i32, i32
  }
  func.func @transform_3(%arg0: i32) -> (i32, i32) {
    %c0_i32 = arith.constant 0 : i32
    %c0_i32_0 = arith.constant 0 : i32
    %c0_i32_1 = arith.constant 0 : i32
    return %c0_i32, %c0_i32_0 : i32, i32
  }
  func.func @transform_4(%arg0: i32) -> (i32, i32) {
    %c0_i32 = arith.constant 0 : i32
    %c0_i32_0 = arith.constant 0 : i32
    %c0_i32_1 = arith.constant 0 : i32
    return %c0_i32, %c0_i32_0 : i32, i32
  }
  func.func @transform_5(%arg0: i32) -> (i32, i32, i32) {
    %c0_i32 = arith.constant 0 : i32
    %c0_i32_0 = arith.constant 0 : i32
    %c0_i32_1 = arith.constant 0 : i32
    return %arg0, %c0_i32, %c0_i32_0 : i32, i32, i32
  }
}

</mosaic_0001>

<llo_original>
// kernel: _lambda_.2
$region0: #{_lambda_.2}
  #allocation0 [shape = 'u32[]', space=smem, size = 0x4, offset = 0x4, fixed_abs, tag = 'smem constant byte address 0x4 - core index']
  #allocation1 [shape = 'u32[144,128]{1,0:T(1,128)}', space=vmem, size = 0x12000, scoped, tag = 'internal scratch']
  %s0 = inlined_call_operand.vmem [shape: bf16[4,128], index: 0, kind: input, shape index: {}]
  %s1 = inlined_call_operand.vmem [shape: bf16[2,128,512], index: 1, kind: input, shape index: {}]
  %s2 = inlined_call_operand.vmem [shape: f32[4,4], index: 2, kind: input, shape index: {}]
  %s3 = inlined_call_operand.vmem [shape: f32[4,1], index: 3, kind: input, shape index: {}]
  %s4 = inlined_call_operand.vmem [shape: f32[4,1], index: 4, kind: input, shape index: {}]
  %s5 = inlined_call_operand.vmem [shape: bf16[2,4,512], index: 5, kind: output, shape index: {}]
  %s6 = sld [smem:[#allocation0]]
  $region53: #{_lambda_.2} parent=0
    _
  %s8 = ssub.s32 1, %s6
  %s9 = scalar_select 0, %s8, %s6
  loop: start=0, step=1, limit=4
  $region2: #{_lambda_.2} parent=0 // loop_pre_header
    _
  $region3: #{_lambda_.2} parent=0 // loop_header
    %s11 = sphi 0, %s15
    %p12 = scmp.ge.s32.totalorder %s11, 4
    %s19 = sphi 0, %s19
    %s21 = sphi 0, %s19
    %s22 = sphi 0, %s21
    %s36 = sphi 0, %s22
    %s42 = sphi 0, %s44
    %s45 = sphi 0, %s42
    %s46 = sphi 0, %s45
    %s62 = sphi 0, %s46
    %s66 = sphi 0, %s66
    %s68 = sphi 0, %s66
    %s69 = sphi 0, %s68
    %s83 = sphi 0, %s69
    %s87 = sphi 0, %s87
    %s89 = sphi 0, %s87
    %s90 = sphi 0, %s89
    %s104 = sphi 0, %s90
    %s108 = sphi 0, %s108
    %s110 = sphi 0, %s108
    %s111 = sphi 0, %s110
    %s125 = sphi 0, %s111
    %s131 = sphi 0, %s133
    %s134 = sphi 0, %s131
    %s135 = sphi 0, %s134
    %s151 = sphi 0, %s135
  $region4: #{_lambda_.2} parent=0 // loop_header_branch
    %14 = sbr.rel (%p12) target = $region8
  $region5: #{_lambda_.2} parent=0 // loop_body
    %s16 = ssub.s32 %s11, 1
    %s17 = ssub.s32 %s11, 2
    %s18 = sadd.s32 %s11, 1
    %s20 = sadd.s32 %s19, 1
    %p23 = scmp.eq.s32.totalorder %s11, 1
    %p24 = scmp.ne.s32.totalorder %s19, %s21
    %p25 = scmp.eq.s32.totalorder %s11, 0
    %p26 = por %p24, %p25
    %p27 = scmp.ne.s32.totalorder %s19, %s21
    %p28 = scmp.eq.s32.totalorder %s16, 1
    %p29 = por %p27, %p28
    %p30 = scmp.ne.s32.totalorder %s21, %s22
    %p31 = scmp.eq.s32.totalorder %s16, 0
    %p32 = por %p30, %p31
    %p33 = scmp.ne.s32.totalorder %s21, %s22
    %p34 = scmp.eq.s32.totalorder %s17, 1
    %p35 = por %p33, %p34
    %p37 = scmp.ne.s32.totalorder %s22, %s36
    %p38 = scmp.eq.s32.totalorder %s17, 0
    %p39 = por %p37, %p38
    %s40 = ssub.s32 %s11, %s18
    %p41 = scmp.eq.s32.totalorder %s40, 0
    %s43 = sadd.s32 %s42, 1
    %s44 = scalar_select %p41, %s42, %s43
    %p47 = pneg %p41
    %p48 = scmp.eq.s32.totalorder %s11, 1
    %p49 = por %p47, %p48
    %p50 = scmp.ne.s32.totalorder %s42, %s45
    %p51 = scmp.eq.s32.totalorder %s11, 0
    %p52 = por %p50, %p51
    %p53 = scmp.ne.s32.totalorder %s42, %s45
    %p54 = scmp.eq.s32.totalorder %s16, 1
    %p55 = por %p53, %p54
    %p56 = scmp.ne.s32.totalorder %s45, %s46
    %p57 = scmp.eq.s32.totalorder %s16, 0
    %p58 = por %p56, %p57
    %p59 = scmp.ne.s32.totalorder %s45, %s46
    %p60 = scmp.eq.s32.totalorder %s17, 1
    %p61 = por %p59, %p60
    %p63 = scmp.ne.s32.totalorder %s46, %s62
    %p64 = scmp.eq.s32.totalorder %s17, 0
    %p65 = por %p63, %p64
    %s67 = sadd.s32 %s66, 1
    %p70 = scmp.eq.s32.totalorder %s11, 1
    %p71 = scmp.ne.s32.totalorder %s66, %s68
    %p72 = scmp.eq.s32.totalorder %s11, 0
    %p73 = por %p71, %p72
    %p74 = scmp.ne.s32.totalorder %s66, %s68
    %p75 = scmp.eq.s32.totalorder %s16, 1
    %p76 = por %p74, %p75
    %p77 = scmp.ne.s32.totalorder %s68, %s69
    %p78 = scmp.eq.s32.totalorder %s16, 0
    %p79 = por %p77, %p78
    %p80 = scmp.ne.s32.totalorder %s68, %s69
    %p81 = scmp.eq.s32.totalorder %s17, 1
    %p82 = por %p80, %p81
    %p84 = scmp.ne.s32.totalorder %s69, %s83
    %p85 = scmp.eq.s32.totalorder %s17, 0
    %p86 = por %p84, %p85
    %s88 = sadd.s32 %s87, 1
    %p91 = scmp.eq.s32.totalorder %s11, 1
    %p92 = scmp.ne.s32.totalorder %s87, %s89
    %p93 = scmp.eq.s32.totalorder %s11, 0
    %p94 = por %p92, %p93
    %p95 = scmp.ne.s32.totalorder %s87, %s89
    %p96 = scmp.eq.s32.totalorder %s16, 1
    %p97 = por %p95, %p96
    %p98 = scmp.ne.s32.totalorder %s89, %s90
    %p99 = scmp.eq.s32.totalorder %s16, 0
    %p100 = por %p98, %p99
    %p101 = scmp.ne.s32.totalorder %s89, %s90
    %p102 = scmp.eq.s32.totalorder %s17, 1
    %p103 = por %p101, %p102
    %p105 = scmp.ne.s32.totalorder %s90, %s104
    %p106 = scmp.eq.s32.totalorder %s17, 0
    %p107 = por %p105, %p106
    %s109 = sadd.s32 %s108, 1
    %p112 = scmp.eq.s32.totalorder %s11, 1
    %p113 = scmp.ne.s32.totalorder %s108, %s110
    %p114 = scmp.eq.s32.totalorder %s11, 0
    %p115 = por %p113, %p114
    %p116 = scmp.ne.s32.totalorder %s108, %s110
    %p117 = scmp.eq.s32.totalorder %s16, 1
    %p118 = por %p116, %p117
    %p119 = scmp.ne.s32.totalorder %s110, %s111
    %p120 = scmp.eq.s32.totalorder %s16, 0
    %p121 = por %p119, %p120
    %p122 = scmp.ne.s32.totalorder %s110, %s111
    %p123 = scmp.eq.s32.totalorder %s17, 1
    %p124 = por %p122, %p123
    %p126 = scmp.ne.s32.totalorder %s111, %s125
    %p127 = scmp.eq.s32.totalorder %s17, 0
    %p128 = por %p126, %p127
    %s129 = ssub.s32 %s11, %s18
    %p130 = scmp.eq.s32.totalorder %s129, 0
    %s132 = sadd.s32 %s131, 1
    %s133 = scalar_select %p130, %s131, %s132
    %p136 = pneg %p130
    %p137 = scmp.eq.s32.totalorder %s11, 1
    %p138 = por %p136, %p137
    %p139 = scmp.ne.s32.totalorder %s131, %s134
    %p140 = scmp.eq.s32.totalorder %s11, 0
    %p141 = por %p139, %p140
    %p142 = scmp.ne.s32.totalorder %s131, %s134
    %p143 = scmp.eq.s32.totalorder %s16, 1
    %p144 = por %p142, %p143
    %p145 = scmp.ne.s32.totalorder %s134, %s135
    %p146 = scmp.eq.s32.totalorder %s16, 0
    %p147 = por %p145, %p146
    %p148 = scmp.ne.s32.totalorder %s134, %s135
    %p149 = scmp.eq.s32.totalorder %s17, 1
    %p150 = por %p148, %p149
    %p152 = scmp.ne.s32.totalorder %s135, %s151
    %p153 = scmp.eq.s32.totalorder %s17, 0
    %p154 = por %p152, %p153
    %p155 = scmp.le.s32.totalorder 1, %s11
    %p156 = scmp.lt.s32.totalorder %s11, 3
    %p157 = pnand %p155, %p156
    %p158 = pneg %p157
    // Predicated region
    $region9: #{_lambda_.2} parent=5 // pred_check
      _
    $region10: #{_lambda_.2} parent=5 // pred_check_branch
      %160 = sbr.rel (%p157) target = $region12
    $region11: #{_lambda_.2} parent=5 // pred_region
      %s161 = ssub.s32 %s11, 1
      // Predicated region
      $region13: #{_lambda_.2} parent=11 // pred_check
        %p162 = pneg %p32
      $region14: #{_lambda_.2} parent=11 // pred_check_branch
        %164 = sbr.rel (%p162) target = $region16
      $region15: #{_lambda_.2} parent=11 // pred_region
        _
      $region16: #{_lambda_.2} parent=11 // pred_fallthru
        _
      // Predicated region
      $region17: #{_lambda_.2} parent=11 // pred_check
        %p165 = pneg %p79
      $region18: #{_lambda_.2} parent=11 // pred_check_branch
        %167 = sbr.rel (%p165) target = $region20
      $region19: #{_lambda_.2} parent=11 // pred_region
        _
      $region20: #{_lambda_.2} parent=11 // pred_fallthru
        _
      // Predicated region
      $region21: #{_lambda_.2} parent=11 // pred_check
        %p168 = pneg %p100
      $region22: #{_lambda_.2} parent=11 // pred_check_branch
        %170 = sbr.rel (%p168) target = $region24
      $region23: #{_lambda_.2} parent=11 // pred_region
        _
      $region24: #{_lambda_.2} parent=11 // pred_fallthru
        _
      // Predicated region
      $region25: #{_lambda_.2} parent=11 // pred_check
        %p171 = pneg %p121
      $region26: #{_lambda_.2} parent=11 // pred_check_branch
        %173 = sbr.rel (%p171) target = $region28
      $region27: #{_lambda_.2} parent=11 // pred_region
        _
      $region28: #{_lambda_.2} parent=11 // pred_fallthru
        _
    $region12: #{_lambda_.2} parent=5 // pred_fallthru
      _
    %p174 = scmp.lt.s32.totalorder %s11, 2
    // Predicated region
    $region29: #{_lambda_.2} parent=5 // pred_check
      %p175 = pneg %p174
    $region30: #{_lambda_.2} parent=5 // pred_check_branch
      %177 = sbr.rel (%p175) target = $region32
    $region31: #{_lambda_.2} parent=5 // pred_region
      // Predicated region
      $region33: #{_lambda_.2} parent=31 // pred_check
        %p178 = pneg %p52
      $region34: #{_lambda_.2} parent=31 // pred_check_branch
        %180 = sbr.rel (%p178) target = $region36
      $region35: #{_lambda_.2} parent=31 // pred_region
        %p181 = scmp.lt.s32.totalorder %s11, 1
        %s182 = scalar_select %p181, %s11, 1
        %s183 = smul.addr %s182, 64
        %s184 = smul.addr %s183, 4
        %s185 = scalar_lea.vmem %s1, %s184
      $region36: #{_lambda_.2} parent=31 // pred_fallthru
        _
    $region32: #{_lambda_.2} parent=5 // pred_fallthru
      _
    %p186 = scmp.le.s32.totalorder 1, %s11
    %p187 = scmp.lt.s32.totalorder %s11, 3
    %p188 = pnand %p186, %p187
    %p189 = pneg %p188
    // Predicated region
    $region37: #{_lambda_.2} parent=5 // pred_check
      _
    $region38: #{_lambda_.2} parent=5 // pred_check_branch
      %191 = sbr.rel (%p188) target = $region40
    $region39: #{_lambda_.2} parent=5 // pred_region
      %s192 = ssub.s32 %s11, 1
      %p193 = pneg %p32
      %p194 = pneg %p29
      %p195 = scmp.lt.s32.totalorder %s16, 1
      %s196 = scalar_select %p195, %s16, 1
      %s197 = smul.addr %s196, 64
      %s198 = smul.addr %s197, 4
      %s199 = scalar_lea.vmem %s1, %s198
      %p200 = pneg %p58
      %p201 = pneg %p55
      %p202 = pneg %p79
      %p203 = pneg %p76
      %p204 = pneg %p100
      %p205 = pneg %p97
      %p206 = pneg %p121
      %p207 = pneg %p118
      %p208 = pneg %p147
      %p209 = pneg %p144
      %p210 = scmp.lt.s32.totalorder %s16, 1
      %s211 = scalar_select %p210, %s16, 1
      %s212 = smul.addr %s211, 4
      %s213 = smul.addr %s212, 2
      %s214 = scalar_lea.vmem %s5, %s213
      %p215 = scmp.lt.s32.totalorder %s16, 1
      %s216 = scalar_select %p215, %s16, 1
      %s217 = smul.addr %s216, 64
      %s218 = smul.addr %s217, 4
      %s219 = scalar_lea.vmem %s1, %s218
      %p220 = scmp.lt.s32.totalorder %s16, 1
      %s221 = scalar_select %p220, %s16, 1
      %s222 = smul.addr %s221, 4
      %s223 = smul.addr %s222, 2
      %s224 = scalar_lea.vmem %s5, %s223
      %v226 = vld [vmem:[%s0] sm:$0x3]
      %v227 = vld [vmem:[%s219] sm:$0xff]
      %v228 = vld [vmem:[%s219 + $0x8] sm:$0xff]
      %v229 = vld [vmem:[%s219 + $0x10] sm:$0xff]
      %v230 = vld [vmem:[%s219 + $0x18] sm:$0xff]
      %v231 = vld [vmem:[%s219 + $0x20] sm:$0xff]
      %v232 = vld [vmem:[%s219 + $0x28] sm:$0xff]
      %v233 = vld [vmem:[%s219 + $0x30] sm:$0xff]
      %v234 = vld [vmem:[%s219 + $0x38] sm:$0xff]
      %v235 = vld [vmem:[%s219 + $0x40] sm:$0xff]
      %v236 = vld [vmem:[%s219 + $0x48] sm:$0xff]
      %v237 = vld [vmem:[%s219 + $0x50] sm:$0xff]
      %v238 = vld [vmem:[%s219 + $0x58] sm:$0xff]
      %v239 = vld [vmem:[%s219 + $0x60] sm:$0xff]
      %v240 = vld [vmem:[%s219 + $0x68] sm:$0xff]
      %v241 = vld [vmem:[%s219 + $0x70] sm:$0xff]
      %v242 = vld [vmem:[%s219 + $0x78] sm:$0xff]
      %v243 = vld [vmem:[%s219 + $0x80] sm:$0xff]
      %v244 = vld [vmem:[%s219 + $0x88] sm:$0xff]
      %v245 = vld [vmem:[%s219 + $0x90] sm:$0xff]
      %v246 = vld [vmem:[%s219 + $0x98] sm:$0xff]
      %v247 = vld [vmem:[%s219 + $0xa0] sm:$0xff]
      %v248 = vld [vmem:[%s219 + $0xa8] sm:$0xff]
      %v249 = vld [vmem:[%s219 + $0xb0] sm:$0xff]
      %v250 = vld [vmem:[%s219 + $0xb8] sm:$0xff]
      %v251 = vld [vmem:[%s219 + $0xc0] sm:$0xff]
      %v252 = vld [vmem:[%s219 + $0xc8] sm:$0xff]
      %v253 = vld [vmem:[%s219 + $0xd0] sm:$0xff]
      %v254 = vld [vmem:[%s219 + $0xd8] sm:$0xff]
      %v255 = vld [vmem:[%s219 + $0xe0] sm:$0xff]
      %v256 = vld [vmem:[%s219 + $0xe8] sm:$0xff]
      %v257 = vld [vmem:[%s219 + $0xf0] sm:$0xff]
      %v258 = vld [vmem:[%s219 + $0xf8] sm:$0xff]
      %v291 = vunpack.c.l.b16 %v227
      %v292 = vunpack.c.h.b16 %v227
      %v293 = vunpack.c.l.b16 %v228
      %v294 = vunpack.c.h.b16 %v228
      %v295 = vunpack.c.l.b16 %v229
      %v296 = vunpack.c.h.b16 %v229
      %v297 = vunpack.c.l.b16 %v230
      %v298 = vunpack.c.h.b16 %v230
      %v299 = vunpack.c.l.b16 %v231
      %v300 = vunpack.c.h.b16 %v231
      %v301 = vunpack.c.l.b16 %v232
      %v302 = vunpack.c.h.b16 %v232
      %v303 = vunpack.c.l.b16 %v233
      %v304 = vunpack.c.h.b16 %v233
      %v305 = vunpack.c.l.b16 %v234
      %v306 = vunpack.c.h.b16 %v234
      %v307 = vunpack.c.l.b16 %v235
      %v308 = vunpack.c.h.b16 %v235
      %v309 = vunpack.c.l.b16 %v236
      %v310 = vunpack.c.h.b16 %v236
      %v311 = vunpack.c.l.b16 %v237
      %v312 = vunpack.c.h.b16 %v237
      %v313 = vunpack.c.l.b16 %v238
      %v314 = vunpack.c.h.b16 %v238
      %v315 = vunpack.c.l.b16 %v239
      %v316 = vunpack.c.h.b16 %v239
      %v317 = vunpack.c.l.b16 %v240
      %v318 = vunpack.c.h.b16 %v240
      %v319 = vunpack.c.l.b16 %v241
      %v320 = vunpack.c.h.b16 %v241
      %v321 = vunpack.c.l.b16 %v242
      %v322 = vunpack.c.h.b16 %v242
      %v323 = vunpack.c.l.b16 %v243
      %v324 = vunpack.c.h.b16 %v243
      %v325 = vunpack.c.l.b16 %v244
      %v326 = vunpack.c.h.b16 %v244
      %v327 = vunpack.c.l.b16 %v245
      %v328 = vunpack.c.h.b16 %v245
      %v329 = vunpack.c.l.b16 %v246
      %v330 = vunpack.c.h.b16 %v246
      %v331 = vunpack.c.l.b16 %v247
      %v332 = vunpack.c.h.b16 %v247
      %v333 = vunpack.c.l.b16 %v248
      %v334 = vunpack.c.h.b16 %v248
      %v335 = vunpack.c.l.b16 %v249
      %v336 = vunpack.c.h.b16 %v249
      %v337 = vunpack.c.l.b16 %v250
      %v338 = vunpack.c.h.b16 %v250
      %v339 = vunpack.c.l.b16 %v251
      %v340 = vunpack.c.h.b16 %v251
      %v341 = vunpack.c.l.b16 %v252
      %v342 = vunpack.c.h.b16 %v252
      %v343 = vunpack.c.l.b16 %v253
      %v344 = vunpack.c.h.b16 %v253
      %v345 = vunpack.c.l.b16 %v254
      %v346 = vunpack.c.h.b16 %v254
      %v347 = vunpack.c.l.b16 %v255
      %v348 = vunpack.c.h.b16 %v255
      %v349 = vunpack.c.l.b16 %v256
      %v350 = vunpack.c.h.b16 %v256
      %v351 = vunpack.c.l.b16 %v257
      %v352 = vunpack.c.h.b16 %v257
      %v353 = vunpack.c.l.b16 %v258
      %v354 = vunpack.c.h.b16 %v258
      %v355 = vpack.c.b16 %v295, %v291
      %v356 = vpack.c.b16 %v296, %v292
      %v357 = vpack.c.b16 %v297, %v293
      %v358 = vpack.c.b16 %v298, %v294
      %v359 = vpack.c.b16 %v303, %v299
      %v360 = vpack.c.b16 %v304, %v300
      %v361 = vpack.c.b16 %v305, %v301
      %v362 = vpack.c.b16 %v306, %v302
      %v363 = vpack.c.b16 %v311, %v307
      %v364 = vpack.c.b16 %v312, %v308
      %v365 = vpack.c.b16 %v313, %v309
      %v366 = vpack.c.b16 %v314, %v310
      %v367 = vpack.c.b16 %v319, %v315
      %v368 = vpack.c.b16 %v320, %v316
      %v369 = vpack.c.b16 %v321, %v317
      %v370 = vpack.c.b16 %v322, %v318
      %v371 = vpack.c.b16 %v327, %v323
      %v372 = vpack.c.b16 %v328, %v324
      %v373 = vpack.c.b16 %v329, %v325
      %v374 = vpack.c.b16 %v330, %v326
      %v375 = vpack.c.b16 %v335, %v331
      %v376 = vpack.c.b16 %v336, %v332
      %v377 = vpack.c.b16 %v337, %v333
      %v378 = vpack.c.b16 %v338, %v334
      %v379 = vpack.c.b16 %v343, %v339
      %v380 = vpack.c.b16 %v344, %v340
      %v381 = vpack.c.b16 %v345, %v341
      %v382 = vpack.c.b16 %v346, %v342
      %v383 = vpack.c.b16 %v351, %v347
      %v384 = vpack.c.b16 %v352, %v348
      %v385 = vpack.c.b16 %v353, %v349
      %v386 = vpack.c.b16 %v354, %v350
      %419 = vmatprep.subr.bf16.mxu0 %v356
      %420 = vmatpush1.bf16.msra.mxu0 %v355
      %421 = vmatprep.subr.bf16.mxu0 %v360
      %422 = vmatpush1.bf16.msra.mxu0 %v359
      %423 = vmatprep.subr.bf16.mxu0 %v364
      %424 = vmatpush1.bf16.msra.mxu0 %v363
      %425 = vmatprep.subr.bf16.mxu0 %v368
      %426 = vmatpush1.bf16.msra.mxu0 %v367
      %427 = vmatprep.subr.bf16.mxu0 %v372
      %428 = vmatpush1.bf16.msra.mxu0 %v371
      %429 = vmatprep.subr.bf16.mxu0 %v376
      %430 = vmatpush1.bf16.msra.mxu0 %v375
      %431 = vmatprep.subr.bf16.mxu0 %v380
      %432 = vmatpush1.bf16.msra.mxu0 %v379
      %433 = vmatprep.subr.bf16.mxu0 %v384
      %434 = vmatpush1.bf16.msra.mxu0 %v383
      %435 = vmatprep.subr.bf16.mxu0 0
      %436 = vmatpush1.bf16.msra.mxu0 0
      %437 = vmatprep.subr.bf16.mxu0 0
      %438 = vmatpush1.bf16.msra.mxu0 0
      %439 = vmatprep.subr.bf16.mxu0 0
      %440 = vmatpush1.bf16.msra.mxu0 0
      %441 = vmatprep.subr.bf16.mxu0 0
      %442 = vmatpush1.bf16.msra.mxu0 0
      %443 = vmatprep.subr.bf16.mxu0 0
      %444 = vmatpush1.bf16.msra.mxu0 0
      %445 = vmatprep.subr.bf16.mxu0 0
      %446 = vmatpush1.bf16.msra.mxu0 0
      %447 = vmatprep.subr.bf16.mxu0 0
      %448 = vmatpush1.bf16.msra.mxu0 0
      %449 = vmatprep.subr.bf16.mxu0 0
      %450 = vmatpush1.bf16.msra.mxu0 0
      %451 = vmatprep.mubr.bf16.mxu0 0
      %452 = vmatmul.mubr.bf16.gmra.mrb[0].mxu0 %v226
      %v453 = vpop.f32.mrb[0].mxu0
      %v454 = vadd.f32 0.0, %v453
      %v455 = vpop.f32.mrb[0].mxu0
      %v456 = vadd.f32 0.0, %v455
      %v457 = vpop.f32.mrb[0].mxu0
      %v458 = vpop.f32.mrb[0].mxu0
      %459 = vdwg.mxu0
      %460 = vmatprep.subr.bf16.mxu0 %v358
      %461 = vmatpush1.bf16.msra.mxu0 %v357
      %462 = vmatprep.subr.bf16.mxu0 %v362
      %463 = vmatpush1.bf16.msra.mxu0 %v361
      %464 = vmatprep.subr.bf16.mxu0 %v366
      %465 = vmatpush1.bf16.msra.mxu0 %v365
      %466 = vmatprep.subr.bf16.mxu0 %v370
      %467 = vmatpush1.bf16.msra.mxu0 %v369
      %468 = vmatprep.subr.bf16.mxu0 %v374
      %469 = vmatpush1.bf16.msra.mxu0 %v373
      %470 = vmatprep.subr.bf16.mxu0 %v378
      %471 = vmatpush1.bf16.msra.mxu0 %v377
      %472 = vmatprep.subr.bf16.mxu0 %v382
      %473 = vmatpush1.bf16.msra.mxu0 %v381
      %474 = vmatprep.subr.bf16.mxu0 %v386
      %475 = vmatpush1.bf16.msra.mxu0 %v385
      %476 = vmatprep.subr.bf16.mxu0 0
      %477 = vmatpush1.bf16.msra.mxu0 0
      %478 = vmatprep.subr.bf16.mxu0 0
      %479 = vmatpush1.bf16.msra.mxu0 0
      %480 = vmatprep.subr.bf16.mxu0 0
      %481 = vmatpush1.bf16.msra.mxu0 0
      %482 = vmatprep.subr.bf16.mxu0 0
      %483 = vmatpush1.bf16.msra.mxu0 0
      %484 = vmatprep.subr.bf16.mxu0 0
      %485 = vmatpush1.bf16.msra.mxu0 0
      %486 = vmatprep.subr.bf16.mxu0 0
      %487 = vmatpush1.bf16.msra.mxu0 0
      %488 = vmatprep.subr.bf16.mxu0 0
      %489 = vmatpush1.bf16.msra.mxu0 0
      %490 = vmatprep.subr.bf16.mxu0 0
      %491 = vmatpush1.bf16.msra.mxu0 0
      %492 = vmatprep.mubr.bf16.mxu0 0
      %493 = vmatmul.mubr.bf16.gmra.mrb[0].mxu0 %v226
      %v494 = vpop.f32.mrb[0].mxu0
      %v495 = vadd.f32 0.0, %v494
      %v496 = vpop.f32.mrb[0].mxu0
      %v497 = vadd.f32 0.0, %v496
      %v498 = vpop.f32.mrb[0].mxu0
      %v499 = vpop.f32.mrb[0].mxu0
      %500 = vdwg.mxu0
      %vm501 = vcmask 1043456
      %v502 = vsel %vm501, %v454, 0.0
      %v503 = vsel %vm501, %v456, 0.0
      %v504 = vadd.f32 %v502, %v503
      %v505 = vsel %vm501, %v495, 0.0
      %v506 = vadd.f32 %v504, %v505
      %v507 = vsel %vm501, %v497, 0.0
      %v508 = vadd.f32 %v506, %v507
      %509 = vadd.xlane.f32.xlu0 %v508
      %v510 = vpop.xlane.xlu0 %509
      %v511 = vmul.f32 %v454, %v454
      %v512 = vmul.f32 %v456, %v456
      %v513 = vmul.f32 %v495, %v495
      %v514 = vmul.f32 %v497, %v497
      %v515 = vsel %vm501, %v511, 0.0
      %v516 = vsel %vm501, %v512, 0.0
      %v517 = vadd.f32 %v515, %v516
      %v518 = vsel %vm501, %v513, 0.0
      %v519 = vadd.f32 %v517, %v518
      %v520 = vsel %vm501, %v514, 0.0
      %v521 = vadd.f32 %v519, %v520
      %522 = vadd.xlane.f32.xlu0 %v521
      %v523 = vpop.xlane.xlu0 %522
      %v524 = vld [vmem:[%s2] sm:$0xf]
      %vm525 = vcmask 31744
      %v527 = vsel %vm525, %v524, 0
      %v530 = vsel %vm501, %v510, 0
      %532 = vmatprep.subr.mxu0 0.0
      %533 = vmatpush1.msra.mxu0 %v530
      %534 = vmatprep.subr.mxu0 0.0
      %535 = vmatpush1.msra.mxu0 0.0
      %536 = vmatprep.subr.mxu0 0.0
      %537 = vmatpush1.msra.mxu0 0.0
      %538 = vmatprep.subr.mxu0 0.0
      %539 = vmatpush1.msra.mxu0 0.0
      %540 = vmatprep.subr.mxu0 0.0
      %541 = vmatpush1.msra.mxu0 0.0
      %542 = vmatprep.subr.mxu0 0.0
      %543 = vmatpush1.msra.mxu0 0.0
      %544 = vmatprep.subr.mxu0 0.0
      %545 = vmatpush1.msra.mxu0 0.0
      %546 = vmatprep.subr.mxu0 0.0
      %547 = vmatpush1.msra.mxu0 0.0
      %548 = vmatprep.subr.mxu0 0.0
      %549 = vmatpush1.msra.mxu0 0.0
      %550 = vmatprep.subr.mxu0 0.0
      %551 = vmatpush1.msra.mxu0 0.0
      %552 = vmatprep.subr.mxu0 0.0
      %553 = vmatpush1.msra.mxu0 0.0
      %554 = vmatprep.subr.mxu0 0.0
      %555 = vmatpush1.msra.mxu0 0.0
      %556 = vmatprep.subr.mxu0 0.0
      %557 = vmatpush1.msra.mxu0 0.0
      %558 = vmatprep.subr.mxu0 0.0
      %559 = vmatpush1.msra.mxu0 0.0
      %560 = vmatprep.subr.mxu0 0.0
      %561 = vmatpush1.msra.mxu0 0.0
      %562 = vmatprep.subr.mxu0 0.0
      %563 = vmatpush1.msra.mxu0 0.0
      %564 = vmatprep.subr.mxu0 0.0
      %565 = vmatpush1.msra.mxu0 0.0
      %566 = vmatprep.subr.mxu0 0.0
      %567 = vmatpush1.msra.mxu0 0.0
      %568 = vmatprep.subr.mxu0 0.0
      %569 = vmatpush1.msra.mxu0 0.0
      %570 = vmatprep.subr.mxu0 0.0
      %571 = vmatpush1.msra.mxu0 0.0
      %572 = vmatprep.subr.mxu0 0.0
      %573 = vmatpush1.msra.mxu0 0.0
      %574 = vmatprep.subr.mxu0 0.0
      %575 = vmatpush1.msra.mxu0 0.0
      %576 = vmatprep.subr.mxu0 0.0
      %577 = vmatpush1.msra.mxu0 0.0
      %578 = vmatprep.subr.mxu0 0.0
      %579 = vmatpush1.msra.mxu0 0.0
      %580 = vmatprep.subr.mxu0 0.0
      %581 = vmatpush1.msra.mxu0 0.0
      %582 = vmatprep.subr.mxu0 0.0
      %583 = vmatpush1.msra.mxu0 0.0
      %584 = vmatprep.subr.mxu0 0.0
      %585 = vmatpush1.msra.mxu0 0.0
      %586 = vmatprep.subr.mxu0 0.0
      %587 = vmatpush1.msra.mxu0 0.0
      %588 = vmatprep.subr.mxu0 0.0
      %589 = vmatpush1.msra.mxu0 0.0
      %590 = vmatprep.subr.mxu0 0.0
      %591 = vmatpush1.msra.mxu0 0.0
      %592 = vmatprep.subr.mxu0 0.0
      %593 = vmatpush1.msra.mxu0 0.0
      %594 = vmatprep.subr.mxu0 0.0
      %595 = vmatpush1.msra.mxu0 0.0
      %596 = vmatprep.mubr.f32.mxu0 0.0
      %597 = vmatmul.mubr.f32.gmra.mrb[0].mxu0 %v527
      %v598 = vpop.f32.mrb[0].mxu0
      %v599 = vadd.f32 0.0, %v598
      %v600 = vpop.f32.mrb[0].mxu0
      %601 = vdwg.mxu0
      %v603 = vsel %vm501, %v523, 0
      %605 = vmatprep.subr.mxu0 0.0
      %606 = vmatpush1.msra.mxu0 %v603
      %607 = vmatprep.subr.mxu0 0.0
      %608 = vmatpush1.msra.mxu0 0.0
      %609 = vmatprep.subr.mxu0 0.0
      %610 = vmatpush1.msra.mxu0 0.0
      %611 = vmatprep.subr.mxu0 0.0
      %612 = vmatpush1.msra.mxu0 0.0
      %613 = vmatprep.subr.mxu0 0.0
      %614 = vmatpush1.msra.mxu0 0.0
      %615 = vmatprep.subr.mxu0 0.0
      %616 = vmatpush1.msra.mxu0 0.0
      %617 = vmatprep.subr.mxu0 0.0
      %618 = vmatpush1.msra.mxu0 0.0
      %619 = vmatprep.subr.mxu0 0.0
      %620 = vmatpush1.msra.mxu0 0.0
      %621 = vmatprep.subr.mxu0 0.0
      %622 = vmatpush1.msra.mxu0 0.0
      %623 = vmatprep.subr.mxu0 0.0
      %624 = vmatpush1.msra.mxu0 0.0
      %625 = vmatprep.subr.mxu0 0.0
      %626 = vmatpush1.msra.mxu0 0.0
      %627 = vmatprep.subr.mxu0 0.0
      %628 = vmatpush1.msra.mxu0 0.0
      %629 = vmatprep.subr.mxu0 0.0
      %630 = vmatpush1.msra.mxu0 0.0
      %631 = vmatprep.subr.mxu0 0.0
      %632 = vmatpush1.msra.mxu0 0.0
      %633 = vmatprep.subr.mxu0 0.0
      %634 = vmatpush1.msra.mxu0 0.0
      %635 = vmatprep.subr.mxu0 0.0
      %636 = vmatpush1.msra.mxu0 0.0
      %637 = vmatprep.subr.mxu0 0.0
      %638 = vmatpush1.msra.mxu0 0.0
      %639 = vmatprep.subr.mxu0 0.0
      %640 = vmatpush1.msra.mxu0 0.0
      %641 = vmatprep.subr.mxu0 0.0
      %642 = vmatpush1.msra.mxu0 0.0
      %643 = vmatprep.subr.mxu0 0.0
      %644 = vmatpush1.msra.mxu0 0.0
      %645 = vmatprep.subr.mxu0 0.0
      %646 = vmatpush1.msra.mxu0 0.0
      %647 = vmatprep.subr.mxu0 0.0
      %648 = vmatpush1.msra.mxu0 0.0
      %649 = vmatprep.subr.mxu0 0.0
      %650 = vmatpush1.msra.mxu0 0.0
      %651 = vmatprep.subr.mxu0 0.0
      %652 = vmatpush1.msra.mxu0 0.0
      %653 = vmatprep.subr.mxu0 0.0
      %654 = vmatpush1.msra.mxu0 0.0
      %655 = vmatprep.subr.mxu0 0.0
      %656 = vmatpush1.msra.mxu0 0.0
      %657 = vmatprep.subr.mxu0 0.0
      %658 = vmatpush1.msra.mxu0 0.0
      %659 = vmatprep.subr.mxu0 0.0
      %660 = vmatpush1.msra.mxu0 0.0
      %661 = vmatprep.subr.mxu0 0.0
      %662 = vmatpush1.msra.mxu0 0.0
      %663 = vmatprep.subr.mxu0 0.0
      %664 = vmatpush1.msra.mxu0 0.0
      %665 = vmatprep.subr.mxu0 0.0
      %666 = vmatpush1.msra.mxu0 0.0
      %667 = vmatprep.subr.mxu0 0.0
      %668 = vmatpush1.msra.mxu0 0.0
      %669 = vmatprep.mubr.f32.mxu0 0.0
      %670 = vmatmul.mubr.f32.gmra.mrb[0].mxu0 %v527
      %v671 = vpop.f32.mrb[0].mxu0
      %v672 = vadd.f32 0.0, %v671
      %v673 = vpop.f32.mrb[0].mxu0
      %674 = vdwg.mxu0
      %v675 = vmul.f32 %v599, %v599
      %v676 = vsub.f32 %v672, %v675
      %v677 = vmax.f32 %v676, 0.0
      %v678 = vadd.f32 %v677, 1e-05
      %v679 = vrsqrt.pop %v678
      %681 = vset.pattern.permute.xlu0 0
      %682 = vperm.xlu0 %681, %v599
      %v683 = vpop.permute.xlu0 %682
      %v685 = vsub.f32 %v454, %v683
      %v686 = vsub.f32 %v456, %v683
      %v687 = vsub.f32 %v495, %v683
      %v688 = vsub.f32 %v497, %v683
      %v689 = vld [vmem:[%s3] sm:$0xf]
      %v690 = vmul.f32 %v679, %v689
      %692 = vset.pattern.permute.xlu0 0
      %693 = vperm.xlu0 %692, %v690
      %v694 = vpop.permute.xlu0 %693
      %v696 = vmul.f32 %v685, %v694
      %v697 = vmul.f32 %v686, %v694
      %v698 = vmul.f32 %v687, %v694
      %v699 = vmul.f32 %v688, %v694
      %v700 = vld [vmem:[%s4] sm:$0xf]
      %702 = vset.pattern.permute.xlu0 0
      %703 = vperm.xlu0 %702, %v700
      %v704 = vpop.permute.xlu0 %703
      %v706 = vadd.f32 %v696, %v704
      %v707 = vadd.f32 %v697, %v704
      %v708 = vadd.f32 %v698, %v704
      %v709 = vadd.f32 %v699, %v704
      %vm710 = vcmp.ge.f32.partialorder %v706, 0.0
      %vm711 = vcmp.ge.f32.partialorder %v707, 0.0
      %vm712 = vcmp.ge.f32.partialorder %v708, 0.0
      %vm713 = vcmp.ge.f32.partialorder %v709, 0.0
      %v714 = vmul.f32 %v706, 0.01
      %v715 = vmul.f32 %v707, 0.01
      %v716 = vmul.f32 %v708, 0.01
      %v717 = vmul.f32 %v709, 0.01
      %v718 = vsel %vm710, %v706, %v714
      %v719 = vsel %vm711, %v707, %v715
      %v720 = vsel %vm712, %v708, %v716
      %v721 = vsel %vm713, %v709, %v717
      %v722 = vpack.c.bf16 %v718, %v718
      %v723 = vpack.c.bf16 %v719, %v719
      %v724 = vpack.c.bf16 %v720, %v720
      %v725 = vpack.c.bf16 %v721, %v721
      %v730 = vcombine.low %v722, %v723
      %v731 = vcombine.low %v724, %v725
      %v733 = vunpack.c.l.s4 1983009808
      %v734 = vunpack.c.0.s8 %v733
      %v735 = vlaneseq
      %v736 = vshrl.u32 %v735, 7
      %v737 = vsub.s32 %v734, %v736
      %v738 = vrot.slane %v730, %v737
      %v740 = vunpack.c.l.s4 1983009808
      %v741 = vunpack.c.0.s8 %v740
      %v742 = vlaneseq
      %v743 = vshrl.u32 %v742, 7
      %v744 = vsub.s32 %v741, %v743
      %v745 = vrot.slane %v731, %v744
      %v746 = vcombine.low %v738, %v745
      %748 = vst [vmem:[%s224] sm:$0xff] %v746
      %p749 = scmp.lt.s32.totalorder %s16, 1
      %s750 = scalar_select %p749, %s16, 1
      %s751 = smul.addr %s750, 4
      %s752 = smul.addr %s751, 2
      %s753 = scalar_lea.vmem %s5, %s752
      // Predicated region
      $region41: #{_lambda_.2} parent=39 // pred_check
        %p754 = pneg %p144
      $region42: #{_lambda_.2} parent=39 // pred_check_branch
        %756 = sbr.rel (%p754) target = $region44
      $region43: #{_lambda_.2} parent=39 // pred_region
        _
      $region44: #{_lambda_.2} parent=39 // pred_fallthru
        _
    $region40: #{_lambda_.2} parent=5 // pred_fallthru
      _
    %p757 = scmp.le.s32.totalorder 2, %s11
    // Predicated region
    $region45: #{_lambda_.2} parent=5 // pred_check
      %p758 = pneg %p757
    $region46: #{_lambda_.2} parent=5 // pred_check_branch
      %760 = sbr.rel (%p758) target = $region48
    $region47: #{_lambda_.2} parent=5 // pred_region
      %s761 = ssub.s32 %s11, 2
      // Predicated region
      $region49: #{_lambda_.2} parent=47 // pred_check
        %p762 = pneg %p150
      $region50: #{_lambda_.2} parent=47 // pred_check_branch
        %764 = sbr.rel (%p762) target = $region52
      $region51: #{_lambda_.2} parent=47 // pred_region
        %p765 = scmp.lt.s32.totalorder %s17, 1
        %s766 = scalar_select %p765, %s17, 1
        %s767 = smul.addr %s766, 4
        %s768 = smul.addr %s767, 2
        %s769 = scalar_lea.vmem %s5, %s768
      $region52: #{_lambda_.2} parent=47 // pred_fallthru
        _
    $region48: #{_lambda_.2} parent=5 // pred_fallthru
      _
  $region6: #{_lambda_.2} parent=0 // loop_footer
    %s15 = sadd.s32 1, %s11
  $region7: #{_lambda_.2} parent=0 // loop_footer_branch
    %10 = sbr.rel target = $region3
  $region8: #{_lambda_.2} parent=0 // loop_exit
    _

// kernel: _lambda_.3
$region0: #{_lambda_.3}
  #allocation0 [shape = 'u32[]', space=smem, size = 0x4, offset = 0x4, fixed_abs, tag = 'smem constant byte address 0x4 - core index']
  #allocation1 [shape = 'u32[144,128]{1,0:T(1,128)}', space=vmem, size = 0x12000, scoped, tag = 'internal scratch']
  %s0 = inlined_call_operand.vmem [shape: bf16[8,128], index: 0, kind: input, shape index: {}]
  %s1 = inlined_call_operand.vmem [shape: bf16[2,128,128], index: 1, kind: input, shape index: {}]
  %s2 = inlined_call_operand.vmem [shape: f32[8,8], index: 2, kind: input, shape index: {}]
  %s3 = inlined_call_operand.vmem [shape: f32[8,1], index: 3, kind: input, shape index: {}]
  %s4 = inlined_call_operand.vmem [shape: f32[8,1], index: 4, kind: input, shape index: {}]
  %s5 = inlined_call_operand.vmem [shape: f32[2,8,128], index: 5, kind: output, shape index: {}]
  %s6 = sld [smem:[#allocation0]]
  $region53: #{_lambda_.3} parent=0
    _
  %s8 = ssub.s32 1, %s6
  %s9 = scalar_select 0, %s8, %s6
  loop: start=0, step=1, limit=4
  $region2: #{_lambda_.3} parent=0 // loop_pre_header
    _
  $region3: #{_lambda_.3} parent=0 // loop_header
    %s11 = sphi 0, %s15
    %p12 = scmp.ge.s32.totalorder %s11, 4
    %s19 = sphi 0, %s19
    %s21 = sphi 0, %s19
    %s22 = sphi 0, %s21
    %s36 = sphi 0, %s22
    %s42 = sphi 0, %s44
    %s45 = sphi 0, %s42
    %s46 = sphi 0, %s45
    %s62 = sphi 0, %s46
    %s66 = sphi 0, %s66
    %s68 = sphi 0, %s66
    %s69 = sphi 0, %s68
    %s83 = sphi 0, %s69
    %s87 = sphi 0, %s87
    %s89 = sphi 0, %s87
    %s90 = sphi 0, %s89
    %s104 = sphi 0, %s90
    %s108 = sphi 0, %s108
    %s110 = sphi 0, %s108
    %s111 = sphi 0, %s110
    %s125 = sphi 0, %s111
    %s131 = sphi 0, %s133
    %s134 = sphi 0, %s131
    %s135 = sphi 0, %s134
    %s151 = sphi 0, %s135
  $region4: #{_lambda_.3} parent=0 // loop_header_branch
    %14 = sbr.rel (%p12) target = $region8
  $region5: #{_lambda_.3} parent=0 // loop_body
    %s16 = ssub.s32 %s11, 1
    %s17 = ssub.s32 %s11, 2
    %s18 = sadd.s32 %s11, 1
    %s20 = sadd.s32 %s19, 1
    %p23 = scmp.eq.s32.totalorder %s11, 1
    %p24 = scmp.ne.s32.totalorder %s19, %s21
    %p25 = scmp.eq.s32.totalorder %s11, 0
    %p26 = por %p24, %p25
    %p27 = scmp.ne.s32.totalorder %s19, %s21
    %p28 = scmp.eq.s32.totalorder %s16, 1
    %p29 = por %p27, %p28
    %p30 = scmp.ne.s32.totalorder %s21, %s22
    %p31 = scmp.eq.s32.totalorder %s16, 0
    %p32 = por %p30, %p31
    %p33 = scmp.ne.s32.totalorder %s21, %s22
    %p34 = scmp.eq.s32.totalorder %s17, 1
    %p35 = por %p33, %p34
    %p37 = scmp.ne.s32.totalorder %s22, %s36
    %p38 = scmp.eq.s32.totalorder %s17, 0
    %p39 = por %p37, %p38
    %s40 = ssub.s32 %s11, %s18
    %p41 = scmp.eq.s32.totalorder %s40, 0
    %s43 = sadd.s32 %s42, 1
    %s44 = scalar_select %p41, %s42, %s43
    %p47 = pneg %p41
    %p48 = scmp.eq.s32.totalorder %s11, 1
    %p49 = por %p47, %p48
    %p50 = scmp.ne.s32.totalorder %s42, %s45
    %p51 = scmp.eq.s32.totalorder %s11, 0
    %p52 = por %p50, %p51
    %p53 = scmp.ne.s32.totalorder %s42, %s45
    %p54 = scmp.eq.s32.totalorder %s16, 1
    %p55 = por %p53, %p54
    %p56 = scmp.ne.s32.totalorder %s45, %s46
    %p57 = scmp.eq.s32.totalorder %s16, 0
    %p58 = por %p56, %p57
    %p59 = scmp.ne.s32.totalorder %s45, %s46
    %p60 = scmp.eq.s32.totalorder %s17, 1
    %p61 = por %p59, %p60
    %p63 = scmp.ne.s32.totalorder %s46, %s62
    %p64 = scmp.eq.s32.totalorder %s17, 0
    %p65 = por %p63, %p64
    %s67 = sadd.s32 %s66, 1
    %p70 = scmp.eq.s32.totalorder %s11, 1
    %p71 = scmp.ne.s32.totalorder %s66, %s68
    %p72 = scmp.eq.s32.totalorder %s11, 0
    %p73 = por %p71, %p72
    %p74 = scmp.ne.s32.totalorder %s66, %s68
    %p75 = scmp.eq.s32.totalorder %s16, 1
    %p76 = por %p74, %p75
    %p77 = scmp.ne.s32.totalorder %s68, %s69
    %p78 = scmp.eq.s32.totalorder %s16, 0
    %p79 = por %p77, %p78
    %p80 = scmp.ne.s32.totalorder %s68, %s69
    %p81 = scmp.eq.s32.totalorder %s17, 1
    %p82 = por %p80, %p81
    %p84 = scmp.ne.s32.totalorder %s69, %s83
    %p85 = scmp.eq.s32.totalorder %s17, 0
    %p86 = por %p84, %p85
    %s88 = sadd.s32 %s87, 1
    %p91 = scmp.eq.s32.totalorder %s11, 1
    %p92 = scmp.ne.s32.totalorder %s87, %s89
    %p93 = scmp.eq.s32.totalorder %s11, 0
    %p94 = por %p92, %p93
    %p95 = scmp.ne.s32.totalorder %s87, %s89
    %p96 = scmp.eq.s32.totalorder %s16, 1
    %p97 = por %p95, %p96
    %p98 = scmp.ne.s32.totalorder %s89, %s90
    %p99 = scmp.eq.s32.totalorder %s16, 0
    %p100 = por %p98, %p99
    %p101 = scmp.ne.s32.totalorder %s89, %s90
    %p102 = scmp.eq.s32.totalorder %s17, 1
    %p103 = por %p101, %p102
    %p105 = scmp.ne.s32.totalorder %s90, %s104
    %p106 = scmp.eq.s32.totalorder %s17, 0
    %p107 = por %p105, %p106
    %s109 = sadd.s32 %s108, 1
    %p112 = scmp.eq.s32.totalorder %s11, 1
    %p113 = scmp.ne.s32.totalorder %s108, %s110
    %p114 = scmp.eq.s32.totalorder %s11, 0
    %p115 = por %p113, %p114
    %p116 = scmp.ne.s32.totalorder %s108, %s110
    %p117 = scmp.eq.s32.totalorder %s16, 1
    %p118 = por %p116, %p117
    %p119 = scmp.ne.s32.totalorder %s110, %s111
    %p120 = scmp.eq.s32.totalorder %s16, 0
    %p121 = por %p119, %p120
    %p122 = scmp.ne.s32.totalorder %s110, %s111
    %p123 = scmp.eq.s32.totalorder %s17, 1
    %p124 = por %p122, %p123
    %p126 = scmp.ne.s32.totalorder %s111, %s125
    %p127 = scmp.eq.s32.totalorder %s17, 0
    %p128 = por %p126, %p127
    %s129 = ssub.s32 %s11, %s18
    %p130 = scmp.eq.s32.totalorder %s129, 0
    %s132 = sadd.s32 %s131, 1
    %s133 = scalar_select %p130, %s131, %s132
    %p136 = pneg %p130
    %p137 = scmp.eq.s32.totalorder %s11, 1
    %p138 = por %p136, %p137
    %p139 = scmp.ne.s32.totalorder %s131, %s134
    %p140 = scmp.eq.s32.totalorder %s11, 0
    %p141 = por %p139, %p140
    %p142 = scmp.ne.s32.totalorder %s131, %s134
    %p143 = scmp.eq.s32.totalorder %s16, 1
    %p144 = por %p142, %p143
    %p145 = scmp.ne.s32.totalorder %s134, %s135
    %p146 = scmp.eq.s32.totalorder %s16, 0
    %p147 = por %p145, %p146
    %p148 = scmp.ne.s32.totalorder %s134, %s135
    %p149 = scmp.eq.s32.totalorder %s17, 1
    %p150 = por %p148, %p149
    %p152 = scmp.ne.s32.totalorder %s135, %s151
    %p153 = scmp.eq.s32.totalorder %s17, 0
    %p154 = por %p152, %p153
    %p155 = scmp.le.s32.totalorder 1, %s11
    %p156 = scmp.lt.s32.totalorder %s11, 3
    %p157 = pnand %p155, %p156
    %p158 = pneg %p157
    // Predicated region
    $region9: #{_lambda_.3} parent=5 // pred_check
      _
    $region10: #{_lambda_.3} parent=5 // pred_check_branch
      %160 = sbr.rel (%p157) target = $region12
    $region11: #{_lambda_.3} parent=5 // pred_region
      %s161 = ssub.s32 %s11, 1
      // Predicated region
      $region13: #{_lambda_.3} parent=11 // pred_check
        %p162 = pneg %p32
      $region14: #{_lambda_.3} parent=11 // pred_check_branch
        %164 = sbr.rel (%p162) target = $region16
      $region15: #{_lambda_.3} parent=11 // pred_region
        _
      $region16: #{_lambda_.3} parent=11 // pred_fallthru
        _
      // Predicated region
      $region17: #{_lambda_.3} parent=11 // pred_check
        %p165 = pneg %p79
      $region18: #{_lambda_.3} parent=11 // pred_check_branch
        %167 = sbr.rel (%p165) target = $region20
      $region19: #{_lambda_.3} parent=11 // pred_region
        _
      $region20: #{_lambda_.3} parent=11 // pred_fallthru
        _
      // Predicated region
      $region21: #{_lambda_.3} parent=11 // pred_check
        %p168 = pneg %p100
      $region22: #{_lambda_.3} parent=11 // pred_check_branch
        %170 = sbr.rel (%p168) target = $region24
      $region23: #{_lambda_.3} parent=11 // pred_region
        _
      $region24: #{_lambda_.3} parent=11 // pred_fallthru
        _
      // Predicated region
      $region25: #{_lambda_.3} parent=11 // pred_check
        %p171 = pneg %p121
      $region26: #{_lambda_.3} parent=11 // pred_check_branch
        %173 = sbr.rel (%p171) target = $region28
      $region27: #{_lambda_.3} parent=11 // pred_region
        _
      $region28: #{_lambda_.3} parent=11 // pred_fallthru
        _
    $region12: #{_lambda_.3} parent=5 // pred_fallthru
      _
    %p174 = scmp.lt.s32.totalorder %s11, 2
    // Predicated region
    $region29: #{_lambda_.3} parent=5 // pred_check
      %p175 = pneg %p174
    $region30: #{_lambda_.3} parent=5 // pred_check_branch
      %177 = sbr.rel (%p175) target = $region32
    $region31: #{_lambda_.3} parent=5 // pred_region
      // Predicated region
      $region33: #{_lambda_.3} parent=31 // pred_check
        %p178 = pneg %p52
      $region34: #{_lambda_.3} parent=31 // pred_check_branch
        %180 = sbr.rel (%p178) target = $region36
      $region35: #{_lambda_.3} parent=31 // pred_region
        %p181 = scmp.lt.s32.totalorder %s11, 1
        %s182 = scalar_select %p181, %s11, 1
        %s183 = smul.addr %s182, 16
        %s184 = smul.addr %s183, 4
        %s185 = scalar_lea.vmem %s1, %s184
      $region36: #{_lambda_.3} parent=31 // pred_fallthru
        _
    $region32: #{_lambda_.3} parent=5 // pred_fallthru
      _
    %p186 = scmp.le.s32.totalorder 1, %s11
    %p187 = scmp.lt.s32.totalorder %s11, 3
    %p188 = pnand %p186, %p187
    %p189 = pneg %p188
    // Predicated region
    $region37: #{_lambda_.3} parent=5 // pred_check
      _
    $region38: #{_lambda_.3} parent=5 // pred_check_branch
      %191 = sbr.rel (%p188) target = $region40
    $region39: #{_lambda_.3} parent=5 // pred_region
      %s192 = ssub.s32 %s11, 1
      %p193 = pneg %p32
      %p194 = pneg %p29
      %p195 = scmp.lt.s32.totalorder %s16, 1
      %s196 = scalar_select %p195, %s16, 1
      %s197 = smul.addr %s196, 16
      %s198 = smul.addr %s197, 4
      %s199 = scalar_lea.vmem %s1, %s198
      %p200 = pneg %p58
      %p201 = pneg %p55
      %p202 = pneg %p79
      %p203 = pneg %p76
      %p204 = pneg %p100
      %p205 = pneg %p97
      %p206 = pneg %p121
      %p207 = pneg %p118
      %p208 = pneg %p147
      %p209 = pneg %p144
      %p210 = scmp.lt.s32.totalorder %s16, 1
      %s211 = scalar_select %p210, %s16, 1
      %s212 = smul.addr %s211, 8
      %s213 = scalar_lea.vmem %s5, %s212
      %p214 = scmp.lt.s32.totalorder %s16, 1
      %s215 = scalar_select %p214, %s16, 1
      %s216 = smul.addr %s215, 16
      %s217 = smul.addr %s216, 4
      %s218 = scalar_lea.vmem %s1, %s217
      %p219 = scmp.lt.s32.totalorder %s16, 1
      %s220 = scalar_select %p219, %s16, 1
      %s221 = smul.addr %s220, 8
      %s222 = scalar_lea.vmem %s5, %s221
      %v224 = vld [vmem:[%s0] sm:$0xf]
      %v225 = vld [vmem:[%s218] sm:$0xf]
      %v226 = vld [vmem:[%s218 + $0x4] sm:$0xf]
      %v227 = vld [vmem:[%s218 + $0x8] sm:$0xf]
      %v228 = vld [vmem:[%s218 + $0xc] sm:$0xf]
      %v229 = vld [vmem:[%s218 + $0x10] sm:$0xf]
      %v230 = vld [vmem:[%s218 + $0x14] sm:$0xf]
      %v231 = vld [vmem:[%s218 + $0x18] sm:$0xf]
      %v232 = vld [vmem:[%s218 + $0x1c] sm:$0xf]
      %v233 = vld [vmem:[%s218 + $0x20] sm:$0xf]
      %v234 = vld [vmem:[%s218 + $0x24] sm:$0xf]
      %v235 = vld [vmem:[%s218 + $0x28] sm:$0xf]
      %v236 = vld [vmem:[%s218 + $0x2c] sm:$0xf]
      %v237 = vld [vmem:[%s218 + $0x30] sm:$0xf]
      %v238 = vld [vmem:[%s218 + $0x34] sm:$0xf]
      %v239 = vld [vmem:[%s218 + $0x38] sm:$0xf]
      %v240 = vld [vmem:[%s218 + $0x3c] sm:$0xf]
      %v257 = vunpack.c.l.b16 %v225
      %v258 = vunpack.c.l.b16 %v226
      %v259 = vunpack.c.l.b16 %v227
      %v260 = vunpack.c.l.b16 %v228
      %v261 = vunpack.c.l.b16 %v229
      %v262 = vunpack.c.l.b16 %v230
      %v263 = vunpack.c.l.b16 %v231
      %v264 = vunpack.c.l.b16 %v232
      %v265 = vunpack.c.l.b16 %v233
      %v266 = vunpack.c.l.b16 %v234
      %v267 = vunpack.c.l.b16 %v235
      %v268 = vunpack.c.l.b16 %v236
      %v269 = vunpack.c.l.b16 %v237
      %v270 = vunpack.c.l.b16 %v238
      %v271 = vunpack.c.l.b16 %v239
      %v272 = vunpack.c.l.b16 %v240
      %v273 = vpack.c.b16 %v258, %v257
      %v274 = vpack.c.b16 %v260, %v259
      %v275 = vpack.c.b16 %v262, %v261
      %v276 = vpack.c.b16 %v264, %v263
      %v277 = vpack.c.b16 %v266, %v265
      %v278 = vpack.c.b16 %v268, %v267
      %v279 = vpack.c.b16 %v270, %v269
      %v280 = vpack.c.b16 %v272, %v271
      %289 = vmatprep.subr.bf16.mxu0 0
      %290 = vmatpush1.bf16.msra.mxu0 %v273
      %291 = vmatprep.subr.bf16.mxu0 0
      %292 = vmatpush1.bf16.msra.mxu0 %v274
      %293 = vmatprep.subr.bf16.mxu0 0
      %294 = vmatpush1.bf16.msra.mxu0 %v275
      %295 = vmatprep.subr.bf16.mxu0 0
      %296 = vmatpush1.bf16.msra.mxu0 %v276
      %297 = vmatprep.subr.bf16.mxu0 0
      %298 = vmatpush1.bf16.msra.mxu0 %v277
      %299 = vmatprep.subr.bf16.mxu0 0
      %300 = vmatpush1.bf16.msra.mxu0 %v278
      %301 = vmatprep.subr.bf16.mxu0 0
      %302 = vmatpush1.bf16.msra.mxu0 %v279
      %303 = vmatprep.subr.bf16.mxu0 0
      %304 = vmatpush1.bf16.msra.mxu0 %v280
      %305 = vmatprep.subr.bf16.mxu0 0
      %306 = vmatpush1.bf16.msra.mxu0 0
      %307 = vmatprep.subr.bf16.mxu0 0
      %308 = vmatpush1.bf16.msra.mxu0 0
      %309 = vmatprep.subr.bf16.mxu0 0
      %310 = vmatpush1.bf16.msra.mxu0 0
      %311 = vmatprep.subr.bf16.mxu0 0
      %312 = vmatpush1.bf16.msra.mxu0 0
      %313 = vmatprep.subr.bf16.mxu0 0
      %314 = vmatpush1.bf16.msra.mxu0 0
      %315 = vmatprep.subr.bf16.mxu0 0
      %316 = vmatpush1.bf16.msra.mxu0 0
      %317 = vmatprep.subr.bf16.mxu0 0
      %318 = vmatpush1.bf16.msra.mxu0 0
      %319 = vmatprep.subr.bf16.mxu0 0
      %320 = vmatpush1.bf16.msra.mxu0 0
      %321 = vmatprep.mubr.bf16.mxu0 0
      %322 = vmatmul.mubr.bf16.gmra.mrb[0].mxu0 %v224
      %v323 = vpop.f32.mrb[0].mxu0
      %v324 = vadd.f32 0.0, %v323
      %v325 = vpop.f32.mrb[0].mxu0
      %v326 = vpop.f32.mrb[0].mxu0
      %v327 = vpop.f32.mrb[0].mxu0
      %328 = vdwg.mxu0
      %329 = vadd.xlane.f32.xlu0 %v324
      %v330 = vpop.xlane.xlu0 %329
      %v331 = vmul.f32 %v324, %v324
      %332 = vadd.xlane.f32.xlu0 %v331
      %v333 = vpop.xlane.xlu0 %332
      %v334 = vld [vmem:[%s2] sm:$0xff]
      %vm335 = vcmask 64512
      %v337 = vsel %vm335, %v334, 0
      %339 = vmatprep.subr.mxu0 0.0
      %340 = vmatpush1.msra.mxu0 %v330
      %341 = vmatprep.subr.mxu0 0.0
      %342 = vmatpush1.msra.mxu0 0.0
      %343 = vmatprep.subr.mxu0 0.0
      %344 = vmatpush1.msra.mxu0 0.0
      %345 = vmatprep.subr.mxu0 0.0
      %346 = vmatpush1.msra.mxu0 0.0
      %347 = vmatprep.subr.mxu0 0.0
      %348 = vmatpush1.msra.mxu0 0.0
      %349 = vmatprep.subr.mxu0 0.0
      %350 = vmatpush1.msra.mxu0 0.0
      %351 = vmatprep.subr.mxu0 0.0
      %352 = vmatpush1.msra.mxu0 0.0
      %353 = vmatprep.subr.mxu0 0.0
      %354 = vmatpush1.msra.mxu0 0.0
      %355 = vmatprep.subr.mxu0 0.0
      %356 = vmatpush1.msra.mxu0 0.0
      %357 = vmatprep.subr.mxu0 0.0
      %358 = vmatpush1.msra.mxu0 0.0
      %359 = vmatprep.subr.mxu0 0.0
      %360 = vmatpush1.msra.mxu0 0.0
      %361 = vmatprep.subr.mxu0 0.0
      %362 = vmatpush1.msra.mxu0 0.0
      %363 = vmatprep.subr.mxu0 0.0
      %364 = vmatpush1.msra.mxu0 0.0
      %365 = vmatprep.subr.mxu0 0.0
      %366 = vmatpush1.msra.mxu0 0.0
      %367 = vmatprep.subr.mxu0 0.0
      %368 = vmatpush1.msra.mxu0 0.0
      %369 = vmatprep.subr.mxu0 0.0
      %370 = vmatpush1.msra.mxu0 0.0
      %371 = vmatprep.subr.mxu0 0.0
      %372 = vmatpush1.msra.mxu0 0.0
      %373 = vmatprep.subr.mxu0 0.0
      %374 = vmatpush1.msra.mxu0 0.0
      %375 = vmatprep.subr.mxu0 0.0
      %376 = vmatpush1.msra.mxu0 0.0
      %377 = vmatprep.subr.mxu0 0.0
      %378 = vmatpush1.msra.mxu0 0.0
      %379 = vmatprep.subr.mxu0 0.0
      %380 = vmatpush1.msra.mxu0 0.0
      %381 = vmatprep.subr.mxu0 0.0
      %382 = vmatpush1.msra.mxu0 0.0
      %383 = vmatprep.subr.mxu0 0.0
      %384 = vmatpush1.msra.mxu0 0.0
      %385 = vmatprep.subr.mxu0 0.0
      %386 = vmatpush1.msra.mxu0 0.0
      %387 = vmatprep.subr.mxu0 0.0
      %388 = vmatpush1.msra.mxu0 0.0
      %389 = vmatprep.subr.mxu0 0.0
      %390 = vmatpush1.msra.mxu0 0.0
      %391 = vmatprep.subr.mxu0 0.0
      %392 = vmatpush1.msra.mxu0 0.0
      %393 = vmatprep.subr.mxu0 0.0
      %394 = vmatpush1.msra.mxu0 0.0
      %395 = vmatprep.subr.mxu0 0.0
      %396 = vmatpush1.msra.mxu0 0.0
      %397 = vmatprep.subr.mxu0 0.0
      %398 = vmatpush1.msra.mxu0 0.0
      %399 = vmatprep.subr.mxu0 0.0
      %400 = vmatpush1.msra.mxu0 0.0
      %401 = vmatprep.subr.mxu0 0.0
      %402 = vmatpush1.msra.mxu0 0.0
      %403 = vmatprep.mubr.f32.mxu0 0.0
      %404 = vmatmul.mubr.f32.gmra.mrb[0].mxu0 %v337
      %v405 = vpop.f32.mrb[0].mxu0
      %v406 = vadd.f32 0.0, %v405
      %v407 = vpop.f32.mrb[0].mxu0
      %408 = vdwg.mxu0
      %409 = vmatprep.subr.mxu0 0.0
      %410 = vmatpush1.msra.mxu0 %v333
      %411 = vmatprep.subr.mxu0 0.0
      %412 = vmatpush1.msra.mxu0 0.0
      %413 = vmatprep.subr.mxu0 0.0
      %414 = vmatpush1.msra.mxu0 0.0
      %415 = vmatprep.subr.mxu0 0.0
      %416 = vmatpush1.msra.mxu0 0.0
      %417 = vmatprep.subr.mxu0 0.0
      %418 = vmatpush1.msra.mxu0 0.0
      %419 = vmatprep.subr.mxu0 0.0
      %420 = vmatpush1.msra.mxu0 0.0
      %421 = vmatprep.subr.mxu0 0.0
      %422 = vmatpush1.msra.mxu0 0.0
      %423 = vmatprep.subr.mxu0 0.0
      %424 = vmatpush1.msra.mxu0 0.0
      %425 = vmatprep.subr.mxu0 0.0
      %426 = vmatpush1.msra.mxu0 0.0
      %427 = vmatprep.subr.mxu0 0.0
      %428 = vmatpush1.msra.mxu0 0.0
      %429 = vmatprep.subr.mxu0 0.0
      %430 = vmatpush1.msra.mxu0 0.0
      %431 = vmatprep.subr.mxu0 0.0
      %432 = vmatpush1.msra.mxu0 0.0
      %433 = vmatprep.subr.mxu0 0.0
      %434 = vmatpush1.msra.mxu0 0.0
      %435 = vmatprep.subr.mxu0 0.0
      %436 = vmatpush1.msra.mxu0 0.0
      %437 = vmatprep.subr.mxu0 0.0
      %438 = vmatpush1.msra.mxu0 0.0
      %439 = vmatprep.subr.mxu0 0.0
      %440 = vmatpush1.msra.mxu0 0.0
      %441 = vmatprep.subr.mxu0 0.0
      %442 = vmatpush1.msra.mxu0 0.0
      %443 = vmatprep.subr.mxu0 0.0
      %444 = vmatpush1.msra.mxu0 0.0
      %445 = vmatprep.subr.mxu0 0.0
      %446 = vmatpush1.msra.mxu0 0.0
      %447 = vmatprep.subr.mxu0 0.0
      %448 = vmatpush1.msra.mxu0 0.0
      %449 = vmatprep.subr.mxu0 0.0
      %450 = vmatpush1.msra.mxu0 0.0
      %451 = vmatprep.subr.mxu0 0.0
      %452 = vmatpush1.msra.mxu0 0.0
      %453 = vmatprep.subr.mxu0 0.0
      %454 = vmatpush1.msra.mxu0 0.0
      %455 = vmatprep.subr.mxu0 0.0
      %456 = vmatpush1.msra.mxu0 0.0
      %457 = vmatprep.subr.mxu0 0.0
      %458 = vmatpush1.msra.mxu0 0.0
      %459 = vmatprep.subr.mxu0 0.0
      %460 = vmatpush1.msra.mxu0 0.0
      %461 = vmatprep.subr.mxu0 0.0
      %462 = vmatpush1.msra.mxu0 0.0
      %463 = vmatprep.subr.mxu0 0.0
      %464 = vmatpush1.msra.mxu0 0.0
      %465 = vmatprep.subr.mxu0 0.0
      %466 = vmatpush1.msra.mxu0 0.0
      %467 = vmatprep.subr.mxu0 0.0
      %468 = vmatpush1.msra.mxu0 0.0
      %469 = vmatprep.subr.mxu0 0.0
      %470 = vmatpush1.msra.mxu0 0.0
      %471 = vmatprep.subr.mxu0 0.0
      %472 = vmatpush1.msra.mxu0 0.0
      %473 = vmatprep.mubr.f32.mxu0 0.0
      %474 = vmatmul.mubr.f32.gmra.mrb[0].mxu0 %v337
      %v475 = vpop.f32.mrb[0].mxu0
      %v476 = vadd.f32 0.0, %v475
      %v477 = vpop.f32.mrb[0].mxu0
      %478 = vdwg.mxu0
      %v479 = vmul.f32 %v406, %v406
      %v480 = vsub.f32 %v476, %v479
      %v481 = vmax.f32 %v480, 0.0
      %v482 = vadd.f32 %v481, 1e-05
      %v483 = vrsqrt.pop %v482
      %485 = vset.pattern.permute.xlu0 0
      %486 = vperm.xlu0 %485, %v406
      %v487 = vpop.permute.xlu0 %486
      %v489 = vsub.f32 %v324, %v487
      %v490 = vld [vmem:[%s3] sm:$0xff]
      %v491 = vmul.f32 %v483, %v490
      %493 = vset.pattern.permute.xlu0 0
      %494 = vperm.xlu0 %493, %v491
      %v495 = vpop.permute.xlu0 %494
      %v497 = vmul.f32 %v489, %v495
      %v498 = vld [vmem:[%s4] sm:$0xff]
      %500 = vset.pattern.permute.xlu0 0
      %501 = vperm.xlu0 %500, %v498
      %v502 = vpop.permute.xlu0 %501
      %v504 = vadd.f32 %v497, %v502
      %vm505 = vcmp.ge.f32.partialorder %v504, 0.0
      %v506 = vmul.f32 %v504, 0.01
      %v507 = vsel %vm505, %v504, %v506
      %508 = vst [vmem:[%s222] sm:$0xff] %v507
      %p509 = scmp.lt.s32.totalorder %s16, 1
      %s510 = scalar_select %p509, %s16, 1
      %s511 = smul.addr %s510, 8
      %s512 = scalar_lea.vmem %s5, %s511
      // Predicated region
      $region41: #{_lambda_.3} parent=39 // pred_check
        %p513 = pneg %p144
      $region42: #{_lambda_.3} parent=39 // pred_check_branch
        %515 = sbr.rel (%p513) target = $region44
      $region43: #{_lambda_.3} parent=39 // pred_region
        _
      $region44: #{_lambda_.3} parent=39 // pred_fallthru
        _
    $region40: #{_lambda_.3} parent=5 // pred_fallthru
      _
    %p516 = scmp.le.s32.totalorder 2, %s11
    // Predicated region
    $region45: #{_lambda_.3} parent=5 // pred_check
      %p517 = pneg %p516
    $region46: #{_lambda_.3} parent=5 // pred_check_branch
      %519 = sbr.rel (%p517) target = $region48
    $region47: #{_lambda_.3} parent=5 // pred_region
      %s520 = ssub.s32 %s11, 2
      // Predicated region
      $region49: #{_lambda_.3} parent=47 // pred_check
        %p521 = pneg %p150
      $region50: #{_lambda_.3} parent=47 // pred_check_branch
        %523 = sbr.rel (%p521) target = $region52
      $region51: #{_lambda_.3} parent=47 // pred_region
        %p524 = scmp.lt.s32.totalorder %s17, 1
        %s525 = scalar_select %p524, %s17, 1
        %s526 = smul.addr %s525, 8
        %s527 = scalar_lea.vmem %s5, %s526
      $region52: #{_lambda_.3} parent=47 // pred_fallthru
        _
    $region48: #{_lambda_.3} parent=5 // pred_fallthru
      _
  $region6: #{_lambda_.3} parent=0 // loop_footer
    %s15 = sadd.s32 1, %s11
  $region7: #{_lambda_.3} parent=0 // loop_footer_branch
    %10 = sbr.rel target = $region3
  $region8: #{_lambda_.3} parent=0 // loop_exit
    _

</llo_original>
